<compile_context>
chip_gen: v6e
topology: v6e:2x2x1
jax: 0.10.0
libtpu: 0.0.40
codegen_flags: <defaults>
</compile_context>

<pallas_src>
import math

import jax
import jax.numpy as jnp
from jax import lax
from jax.experimental import pallas as pl
from jax.experimental.pallas import tpu as pltpu


def _softplus(x):
    # matches torch.nn.Softplus(beta=1, threshold=20)
    return jnp.where(x > 20.0, x, jnp.log1p(jnp.exp(jnp.minimum(x, 20.0))))


# -----------------------------------------------------------------------------
# Fused kernel: whole RK4 solve of the (block-diagonally fused, permutation-
# folded) DNNBlock, operating directly on the interleaved state.
# -----------------------------------------------------------------------------
def make_additive_kernel(n_hlayer, Nt, t0, dt, tb, w, h2, acts_dtype):
    """Kernel refs: x (TB,W), fused params..., out (TB,W).

    Fused params (internal hidden state is [h1 | h2], width 2H):
      w0t (1,2H), w0x (W,2H)  [rows interleaved -> consumes interleaved x],
      b0 (1,2H),
      [wh (2H,2H), bh (1,2H)] * n_hlayer,
      wf (2H,W)  [anti-diagonal blocks, columns interleaved -> produces the
                  interleaved derivative dx/dt directly],
      bf (1,W)
    """
    n_params = 3 + 2 * n_hlayer + 2
    half_dt = dt * 0.5
    sixth_dt = dt / 6.0

    def kernel(x_ref, *refs):
        out_ref = refs[n_params]

        # Load weights once; at 2H=64 they comfortably fit the vreg file/VMEM.
        # (For 2H >= ~256, index the refs per-use inside f() instead to avoid
        #  vreg spills — the 3 vld slots have plenty of slack here.)
        w0t = refs[0][...]
        w0x = refs[1][...]
        b0 = refs[2][...]
        hidden = [(refs[3 + 2 * i][...], refs[4 + 2 * i][...])
                  for i in range(n_hlayer)]
        wf = refs[3 + 2 * n_hlayer][...]
        bf = refs[4 + 2 * n_hlayer][...]

        # Hoist loop-invariant broadcasts out of the RK4 loop (no CSE of
        # broadcast_in_dim otherwise -> re-emitted 4*Nt times).
        w0t_b = jnp.broadcast_to(w0t, (tb, h2))
        b0_b = jnp.broadcast_to(b0, (tb, h2))
        hidden_b = [(wl, jnp.broadcast_to(bl, (tb, h2))) for wl, bl in hidden]
        bf_b = jnp.broadcast_to(bf, (tb, w))

        def f(lin0_t, u):
            # lin0_t = t*w0t + b0 already broadcast to (tb, 2H).
            h = jnp.dot(u.astype(acts_dtype), w0x,
                        preferred_element_type=jnp.float32) + lin0_t
            for (wl, bl) in hidden_b:
                h = _softplus(h)
                h = jnp.dot(h.astype(acts_dtype), wl,
                            preferred_element_type=jnp.float32) + bl
            h = _softplus(h)
            return jnp.dot(h.astype(acts_dtype), wf,
                           preferred_element_type=jnp.float32) + bf_b

        def step(i, u):
            t = t0 + i * dt                      # no serial t carry, no drift
            s1 = t * w0t_b + b0_b
            s23 = s1 + half_dt * w0t_b           # shared by k2 and k3
            s4 = s1 + dt * w0t_b
            k1 = f(s1, u)
            k2 = f(s23, u + half_dt * k1)
            k3 = f(s23, u + half_dt * k2)
            k4 = f(s4, u + dt * k3)
            return u + sixth_dt * (k1 + 2.0 * (k2 + k3) + k4)

        unroll = Nt if Nt <= 8 else 4
        u_final = lax.fori_loop(0, Nt, step, x_ref[...], unroll=unroll)
        out_ref[...] = u_final.astype(out_ref.dtype)

    return kernel


# -----------------------------------------------------------------------------
# Trace-time fusion of the two chains into block-structured weights, with the
# even/odd interleave permutation folded into the first and last layers.
# -----------------------------------------------------------------------------
def fuse_params(params1, params2, n_hlayer, matmul_dtype=jnp.float32):
    w0t1, w0x1, b01 = params1[0], params1[1], params1[2]
    w0t2, w0x2, b02 = params2[0], params2[1], params2[2]
    din, hdim = w0x1.shape                     # din = W//2
    dout = params1[-1].shape[1]                # = W//2
    f32 = jnp.float32

    # First layer: rows interleaved so row 2j (even feature -> chain1) feeds
    # the h1 block and row 2j+1 (odd feature -> chain2) feeds the h2 block.
    z_dh = jnp.zeros((din, hdim), f32)
    w0x1_p = jnp.concatenate([w0x1, z_dh], axis=1)          # (din, 2H)
    w0x2_p = jnp.concatenate([z_dh, w0x2], axis=1)          # (din, 2H)
    w0x = jnp.stack([w0x1_p, w0x2_p], axis=1).reshape(2 * din, 2 * hdim)

    w0t = jnp.concatenate([w0t1, w0t2], axis=1)             # (1, 2H)
    b0 = jnp.concatenate([b01, b02], axis=1)                # (1, 2H)

    fused = [w0t, w0x.astype(matmul_dtype), b0]

    # Hidden layers: block-diagonal on the internal [h1 | h2] state.
    z_hh = jnp.zeros((hdim, hdim), f32)
    for i in range(n_hlayer):
        w1, b1 = params1[3 + 2 * i], params1[4 + 2 * i]
        w2, b2 = params2[3 + 2 * i], params2[4 + 2 * i]
        fused.append(jnp.block([[w1, z_hh], [z_hh, w2]]).astype(matmul_dtype))
        fused.append(jnp.concatenate([b1, b2], axis=1))

    # Final layer: anti-diagonal blocks + interleaved columns, so
    # out[:, 2j] = chain2(h2)[:, j] and out[:, 2j+1] = chain1(h1)[:, j]
    # == the module's interleaved derivative dx/dt.
    wf1, bf1 = params1[3 + 2 * n_hlayer], params1[4 + 2 * n_hlayer]
    wf2, bf2 = params2[3 + 2 * n_hlayer], params2[4 + 2 * n_hlayer]
    z_hd = jnp.zeros((hdim, dout), f32)
    c_even = jnp.concatenate([z_hd, wf2], axis=0)           # (2H, dout)
    c_odd = jnp.concatenate([wf1, z_hd], axis=0)            # (2H, dout)
    wf = jnp.stack([c_even, c_odd], axis=2).reshape(2 * hdim, 2 * dout)
    bf = jnp.stack([bf2, bf1], axis=2).reshape(1, 2 * dout)

    fused.append(wf.astype(matmul_dtype))
    fused.append(bf)
    return fused


def _pick_batch_tile(B):
    # Largest multiple-of-8 tile that divides B (lane/sublane friendly and a
    # valid BlockSpec second-to-last dim); otherwise fall back to the full
    # batch as a single block (full-array dims are always legal).
    for tb in (256, 128, 64, 32, 16, 8):
        if B % tb == 0:
            return tb
    return B


# -----------------------------------------------------------------------------
# Additive.forward
# -----------------------------------------------------------------------------
def additive_forward(x, params1, params2, n_hlayer, Nt, reverse=False,
                     use_bf16=True):
    B, W = x.shape
    h2 = 2 * params1[1].shape[1]

    matmul_dtype = jnp.bfloat16 if use_bf16 else jnp.float32
    fused = fuse_params(params1, params2, n_hlayer, matmul_dtype)

    dt, t0 = 1.0 / Nt, 0.0
    if reverse:
        dt, t0 = -dt, 1.0

    TB = _pick_batch_tile(B)
    grid = (B // TB,)

    # VMEM budget: weights (resident) + double-buffered state tiles, with
    # headroom.  Sized against v7x's 64 MiB physical VMEM.
    weight_bytes = sum(int(p.size) * p.dtype.itemsize for p in fused)
    io_bytes = 4 * TB * W * 4                      # in + out, double-buffered
    vmem_limit = int(min(48 * 2**20,
                         max(16 * 2**20, 4 * (weight_bytes + io_bytes))))

    # Advisory cost for XLA's scheduler: 4 stages per step, Nt steps.
    flops = 4 * Nt * 2 * B * (W * h2 + n_hlayer * h2 * h2 + h2 * W)
    transcendentals = 4 * Nt * (n_hlayer + 1) * B * h2 * 2   # exp + log1p
    bytes_accessed = 2 * B * W * 4 + weight_bytes

    kernel = make_additive_kernel(n_hlayer, Nt, t0, dt, TB, W, h2,
                                  matmul_dtype)

    out = pl.pallas_call(
        kernel,
        out_shape=jax.ShapeDtypeStruct((B, W), jnp.float32),
        grid=grid,
        in_specs=[pl.BlockSpec((TB, W), lambda i: (i, 0))]
                 + [pl.BlockSpec(p.shape, lambda i: (0, 0)) for p in fused],
        out_specs=pl.BlockSpec((TB, W), lambda i: (i, 0)),
        input_output_aliases={0: 0},
        compiler_params=pltpu.CompilerParams(
            dimension_semantics=("parallel",),
            vmem_limit_bytes=vmem_limit),
        cost_estimate=pl.CostEstimate(
            flops=flops, transcendentals=transcendentals,
            bytes_accessed=bytes_accessed),
    )(x, *fused)

    if reverse:
        return out
    return out, 0.0


# -----------------------------------------------------------------------------
# Pure-JAX reference (unfused, interleaved state) for correctness checking.
# -----------------------------------------------------------------------------
def _chain_ref(t, x, params, n_hlayer):
    hi = jax.lax.Precision.HIGHEST
    h = t * params[0] + jnp.dot(x, params[1], precision=hi) + params[2]
    idx = 3
    for _ in range(n_hlayer):
        h = _softplus(h)
        h = jnp.dot(h, params[idx], precision=hi) + params[idx + 1]
        idx += 2
    h = _softplus(h)
    return jnp.dot(h, params[idx], precision=hi) + params[idx + 1]


def additive_ref(x, params1, params2, n_hlayer, Nt, reverse=False):
    B, W = x.shape
    half = W // 2

    def f(t, z):
        zr = z.reshape(B, half, 2)
        o1 = _chain_ref(t, zr[:, :, 0], params1, n_hlayer)
        o2 = _chain_ref(t, zr[:, :, 1], params2, n_hlayer)
        return jnp.stack([o2, o1], axis=2).reshape(B, W)

    dt, t = 1.0 / Nt, 0.0
    if reverse:
        dt, t = -dt, 1.0
    z = x
    for _ in range(Nt):
        k1 = f(t, z)
        k2 = f(t + dt / 2.0, z + (dt / 2.0) * k1)
        k3 = f(t + dt / 2.0, z + (dt / 2.0) * k2)
        k4 = f(t + dt, z + dt * k3)
        z = z + (dt / 6.0) * (k1 + 2.0 * k2 + 2.0 * k3 + k4)
        t = t + dt
    return z


# -----------------------------------------------------------------------------
# Deterministic init matching nn.Linear default (U(-1/sqrt(fan_in), +...)).
# First layer is stored split as (t-row, x-rows) to avoid an in-kernel concat.
# -----------------------------------------------------------------------------
def init_chain(key, din, hdim, dout, n_hlayer):
    dims = [(din + 1, hdim)] + [(hdim, hdim)] * n_hlayer + [(hdim, dout)]
    layers = []
    for fan_in, fan_out in dims:
        key, kw, kb = jax.random.split(key, 3)
        bound = 1.0 / math.sqrt(fan_in)
        w = jax.random.uniform(kw, (fan_in, fan_out), jnp.float32, -bound, bound)
        b = jax.random.uniform(kb, (1, fan_out), jnp.float32, -bound, bound)
        layers.append((w, b))
    w0, b0 = layers[0]
    flat = [w0[:1, :], w0[1:, :], b0]
    for w, b in layers[1:]:
        flat += [w, b]
    return flat, key


# TODO(synk): DNNBlock.nfe (Python-side mutable eval counter) has no meaningful
# kernel-side equivalent and is not carried.

if __name__ == "__main__":
    # Additive(io_dim, Hdim, Hlayers, Nt) at small, module-consistent shapes.
    B, io_dim, Hdim, Hlayers, Nt = 4, 16, 32, 1, 2
    din = dout = io_dim // 2

    key = jax.random.PRNGKey(0)
    params1, key = init_chain(key, din, Hdim, dout, Hlayers)   # DNNBlock.chain1
    params2, key = init_chain(key, din, Hdim, dout, Hlayers)   # DNNBlock.chain2
    key, kx = jax.random.split(key)
    x = jax.random.normal(kx, (B, io_dim), jnp.float32)

    fwd = jax.jit(additive_forward, static_argnums=(3, 4, 5, 6))
    ref = additive_ref(x, params1, params2, Hlayers, Nt, reverse=False)

    # f32 MXU operands: tight check against the HIGHEST-precision reference.
    out32, reg = fwd(x, params1, params2, Hlayers, Nt, False, False)
    out32 = jax.block_until_ready(out32)
    assert out32.shape == (B, io_dim) and out32.dtype == jnp.float32
    assert reg == 0.0
    assert jnp.allclose(out32, ref, atol=5e-3, rtol=5e-3), (
        float(jnp.max(jnp.abs(out32 - ref))))

    # bf16 MXU operands (f32 accumulate + f32 elementwise path): looser check,
    # RK4 compounds the per-stage bf16 rounding over Nt steps.
    out16, reg16 = fwd(x, params1, params2, Hlayers, Nt, False, True)
    out16 = jax.block_until_ready(out16)
    assert out16.shape == (B, io_dim) and out16.dtype == jnp.float32
    assert reg16 == 0.0
    assert jnp.allclose(out16, ref, atol=5e-2, rtol=5e-2), (
        float(jnp.max(jnp.abs(out16 - ref))))

    print("KERNEL_OK")
</pallas_src>

<mosaic_0001>
module attributes {stable_mosaic.version = 11 : i64} {
  func.func @kernel(%arg0: i32, %arg1: memref<4x16xf32, #tpu.memory_space<vmem>>, %arg2: memref<1x64xf32, #tpu.memory_space<vmem>>, %arg3: memref<16x64xf32, #tpu.memory_space<vmem>>, %arg4: memref<1x64xf32, #tpu.memory_space<vmem>>, %arg5: memref<64x64xf32, #tpu.memory_space<vmem>>, %arg6: memref<1x64xf32, #tpu.memory_space<vmem>>, %arg7: memref<64x16xf32, #tpu.memory_space<vmem>>, %arg8: memref<1x16xf32, #tpu.memory_space<vmem>>, %arg9: memref<4x16xf32, #tpu.memory_space<vmem>>) attributes {dimension_semantics = [#tpu.dimension_semantics<parallel>], iteration_bounds = array<i64: 1>, scalar_prefetch = 0 : i64, scratch_operands = 0 : i64, tpu.core_type = #tpu.core_type<tc>, window_params = [{transform_indices = @transform_0, window_bounds = array<i64: 4, 16>}, {pipeline_mode = #tpu.pipeline_mode<synchronous>, transform_indices = @transform_1, window_bounds = array<i64: 1, 64>}, {pipeline_mode = #tpu.pipeline_mode<synchronous>, transform_indices = @transform_2, window_bounds = array<i64: 16, 64>}, {pipeline_mode = #tpu.pipeline_mode<synchronous>, transform_indices = @transform_3, window_bounds = array<i64: 1, 64>}, {pipeline_mode = #tpu.pipeline_mode<synchronous>, transform_indices = @transform_4, window_bounds = array<i64: 64, 64>}, {pipeline_mode = #tpu.pipeline_mode<synchronous>, transform_indices = @transform_5, window_bounds = array<i64: 1, 64>}, {pipeline_mode = #tpu.pipeline_mode<synchronous>, transform_indices = @transform_6, window_bounds = array<i64: 64, 16>}, {pipeline_mode = #tpu.pipeline_mode<synchronous>, transform_indices = @transform_7, window_bounds = array<i64: 1, 16>}, {transform_indices = @transform_8, window_bounds = array<i64: 4, 16>}]} {
    %c0 = arith.constant 0 : index
    %c0_0 = arith.constant 0 : index
    %0 = vector.load %arg2[%c0, %c0_0] : memref<1x64xf32, #tpu.memory_space<vmem>>, vector<1x64xf32>
    %c0_1 = arith.constant 0 : index
    %c0_2 = arith.constant 0 : index
    %1 = vector.load %arg3[%c0_1, %c0_2] : memref<16x64xf32, #tpu.memory_space<vmem>>, vector<16x64xf32>
    %c0_3 = arith.constant 0 : index
    %c0_4 = arith.constant 0 : index
    %2 = vector.load %arg4[%c0_3, %c0_4] : memref<1x64xf32, #tpu.memory_space<vmem>>, vector<1x64xf32>
    %c0_5 = arith.constant 0 : index
    %c0_6 = arith.constant 0 : index
    %3 = vector.load %arg5[%c0_5, %c0_6] : memref<64x64xf32, #tpu.memory_space<vmem>>, vector<64x64xf32>
    %c0_7 = arith.constant 0 : index
    %c0_8 = arith.constant 0 : index
    %4 = vector.load %arg6[%c0_7, %c0_8] : memref<1x64xf32, #tpu.memory_space<vmem>>, vector<1x64xf32>
    %c0_9 = arith.constant 0 : index
    %c0_10 = arith.constant 0 : index
    %5 = vector.load %arg7[%c0_9, %c0_10] : memref<64x16xf32, #tpu.memory_space<vmem>>, vector<64x16xf32>
    %c0_11 = arith.constant 0 : index
    %c0_12 = arith.constant 0 : index
    %6 = vector.load %arg8[%c0_11, %c0_12] : memref<1x16xf32, #tpu.memory_space<vmem>>, vector<1x16xf32>
    %7 = vector.shape_cast %0 : vector<1x64xf32> to vector<1x64xf32>
    %8 = vector.broadcast %7 : vector<1x64xf32> to vector<4x64xf32>
    %9 = vector.shape_cast %2 : vector<1x64xf32> to vector<1x64xf32>
    %10 = vector.broadcast %9 : vector<1x64xf32> to vector<4x64xf32>
    %11 = vector.shape_cast %4 : vector<1x64xf32> to vector<1x64xf32>
    %12 = vector.broadcast %11 : vector<1x64xf32> to vector<4x64xf32>
    %13 = vector.shape_cast %6 : vector<1x16xf32> to vector<1x16xf32>
    %14 = vector.broadcast %13 : vector<1x16xf32> to vector<4x16xf32>
    %c0_13 = arith.constant 0 : index
    %c0_14 = arith.constant 0 : index
    %15 = vector.load %arg1[%c0_13, %c0_14] : memref<4x16xf32, #tpu.memory_space<vmem>>, vector<4x16xf32>
    %c0_i32 = arith.constant 0 : i32
    %16 = arith.sitofp %c0_i32 : i32 to f32
    %cst = arith.constant 5.000000e-01 : f32
    %17 = arith.mulf %16, %cst : f32
    %cst_15 = arith.constant 0.000000e+00 : f32
    %18 = arith.addf %cst_15, %17 : f32
    %19 = vector.broadcast %18 : f32 to vector<4x64xf32>
    %20 = arith.mulf %19, %8 : vector<4x64xf32>
    %21 = arith.addf %20, %10 : vector<4x64xf32>
    %cst_16 = arith.constant 2.500000e-01 : f32
    %22 = vector.broadcast %cst_16 : f32 to vector<4x64xf32>
    %23 = arith.mulf %22, %8 : vector<4x64xf32>
    %24 = arith.addf %21, %23 : vector<4x64xf32>
    %cst_17 = arith.constant 5.000000e-01 : f32
    %25 = vector.broadcast %cst_17 : f32 to vector<4x64xf32>
    %26 = arith.mulf %25, %8 : vector<4x64xf32>
    %27 = arith.addf %21, %26 : vector<4x64xf32>
    %cst_18 = arith.constant dense<0.000000e+00> : vector<4x64xf32>
    %28 = tpu.matmul %15, %1, %cst_18 {dimension_numbers = #tpu.dot_dimension_numbers<[1], [0], [0], [1], [0, 0, 1, 1], [], []>} : vector<4x16xf32>, vector<16x64xf32>, vector<4x64xf32> -> vector<4x64xf32>
    %29 = arith.addf %28, %21 : vector<4x64xf32>
    %cst_19 = arith.constant 2.000000e+01 : f32
    %30 = vector.broadcast %cst_19 : f32 to vector<4x64xf32>
    %31 = arith.cmpf ogt, %29, %30 : vector<4x64xf32>
    %cst_20 = arith.constant 2.000000e+01 : f32
    %32 = vector.broadcast %cst_20 : f32 to vector<4x64xf32>
    %33 = arith.minimumf %29, %32 : vector<4x64xf32>
    %34 = math.exp %33 : vector<4x64xf32>
    %35 = math.log1p %34 : vector<4x64xf32>
    %36 = arith.select %31, %29, %35 : vector<4x64xi1>, vector<4x64xf32>
    %cst_21 = arith.constant dense<0.000000e+00> : vector<4x64xf32>
    %37 = tpu.matmul %36, %3, %cst_21 {dimension_numbers = #tpu.dot_dimension_numbers<[1], [0], [0], [1], [0, 0, 1, 1], [], []>} : vector<4x64xf32>, vector<64x64xf32>, vector<4x64xf32> -> vector<4x64xf32>
    %38 = arith.addf %37, %12 : vector<4x64xf32>
    %cst_22 = arith.constant 2.000000e+01 : f32
    %39 = vector.broadcast %cst_22 : f32 to vector<4x64xf32>
    %40 = arith.cmpf ogt, %38, %39 : vector<4x64xf32>
    %cst_23 = arith.constant 2.000000e+01 : f32
    %41 = vector.broadcast %cst_23 : f32 to vector<4x64xf32>
    %42 = arith.minimumf %38, %41 : vector<4x64xf32>
    %43 = math.exp %42 : vector<4x64xf32>
    %44 = math.log1p %43 : vector<4x64xf32>
    %45 = arith.select %40, %38, %44 : vector<4x64xi1>, vector<4x64xf32>
    %cst_24 = arith.constant dense<0.000000e+00> : vector<4x16xf32>
    %46 = tpu.matmul %45, %5, %cst_24 {dimension_numbers = #tpu.dot_dimension_numbers<[1], [0], [0], [1], [0, 0, 1, 1], [], []>} : vector<4x64xf32>, vector<64x16xf32>, vector<4x16xf32> -> vector<4x16xf32>
    %47 = arith.addf %46, %14 : vector<4x16xf32>
    %cst_25 = arith.constant 2.500000e-01 : f32
    %48 = vector.broadcast %cst_25 : f32 to vector<4x16xf32>
    %49 = arith.mulf %48, %47 : vector<4x16xf32>
    %50 = arith.addf %15, %49 : vector<4x16xf32>
    %cst_26 = arith.constant dense<0.000000e+00> : vector<4x64xf32>
    %51 = tpu.matmul %50, %1, %cst_26 {dimension_numbers = #tpu.dot_dimension_numbers<[1], [0], [0], [1], [0, 0, 1, 1], [], []>} : vector<4x16xf32>, vector<16x64xf32>, vector<4x64xf32> -> vector<4x64xf32>
    %52 = arith.addf %51, %24 : vector<4x64xf32>
    %cst_27 = arith.constant 2.000000e+01 : f32
    %53 = vector.broadcast %cst_27 : f32 to vector<4x64xf32>
    %54 = arith.cmpf ogt, %52, %53 : vector<4x64xf32>
    %cst_28 = arith.constant 2.000000e+01 : f32
    %55 = vector.broadcast %cst_28 : f32 to vector<4x64xf32>
    %56 = arith.minimumf %52, %55 : vector<4x64xf32>
    %57 = math.exp %56 : vector<4x64xf32>
    %58 = math.log1p %57 : vector<4x64xf32>
    %59 = arith.select %54, %52, %58 : vector<4x64xi1>, vector<4x64xf32>
    %cst_29 = arith.constant dense<0.000000e+00> : vector<4x64xf32>
    %60 = tpu.matmul %59, %3, %cst_29 {dimension_numbers = #tpu.dot_dimension_numbers<[1], [0], [0], [1], [0, 0, 1, 1], [], []>} : vector<4x64xf32>, vector<64x64xf32>, vector<4x64xf32> -> vector<4x64xf32>
    %61 = arith.addf %60, %12 : vector<4x64xf32>
    %cst_30 = arith.constant 2.000000e+01 : f32
    %62 = vector.broadcast %cst_30 : f32 to vector<4x64xf32>
    %63 = arith.cmpf ogt, %61, %62 : vector<4x64xf32>
    %cst_31 = arith.constant 2.000000e+01 : f32
    %64 = vector.broadcast %cst_31 : f32 to vector<4x64xf32>
    %65 = arith.minimumf %61, %64 : vector<4x64xf32>
    %66 = math.exp %65 : vector<4x64xf32>
    %67 = math.log1p %66 : vector<4x64xf32>
    %68 = arith.select %63, %61, %67 : vector<4x64xi1>, vector<4x64xf32>
    %cst_32 = arith.constant dense<0.000000e+00> : vector<4x16xf32>
    %69 = tpu.matmul %68, %5, %cst_32 {dimension_numbers = #tpu.dot_dimension_numbers<[1], [0], [0], [1], [0, 0, 1, 1], [], []>} : vector<4x64xf32>, vector<64x16xf32>, vector<4x16xf32> -> vector<4x16xf32>
    %70 = arith.addf %69, %14 : vector<4x16xf32>
    %cst_33 = arith.constant 2.500000e-01 : f32
    %71 = vector.broadcast %cst_33 : f32 to vector<4x16xf32>
    %72 = arith.mulf %71, %70 : vector<4x16xf32>
    %73 = arith.addf %15, %72 : vector<4x16xf32>
    %cst_34 = arith.constant dense<0.000000e+00> : vector<4x64xf32>
    %74 = tpu.matmul %73, %1, %cst_34 {dimension_numbers = #tpu.dot_dimension_numbers<[1], [0], [0], [1], [0, 0, 1, 1], [], []>} : vector<4x16xf32>, vector<16x64xf32>, vector<4x64xf32> -> vector<4x64xf32>
    %75 = arith.addf %74, %24 : vector<4x64xf32>
    %cst_35 = arith.constant 2.000000e+01 : f32
    %76 = vector.broadcast %cst_35 : f32 to vector<4x64xf32>
    %77 = arith.cmpf ogt, %75, %76 : vector<4x64xf32>
    %cst_36 = arith.constant 2.000000e+01 : f32
    %78 = vector.broadcast %cst_36 : f32 to vector<4x64xf32>
    %79 = arith.minimumf %75, %78 : vector<4x64xf32>
    %80 = math.exp %79 : vector<4x64xf32>
    %81 = math.log1p %80 : vector<4x64xf32>
    %82 = arith.select %77, %75, %81 : vector<4x64xi1>, vector<4x64xf32>
    %cst_37 = arith.constant dense<0.000000e+00> : vector<4x64xf32>
    %83 = tpu.matmul %82, %3, %cst_37 {dimension_numbers = #tpu.dot_dimension_numbers<[1], [0], [0], [1], [0, 0, 1, 1], [], []>} : vector<4x64xf32>, vector<64x64xf32>, vector<4x64xf32> -> vector<4x64xf32>
    %84 = arith.addf %83, %12 : vector<4x64xf32>
    %cst_38 = arith.constant 2.000000e+01 : f32
    %85 = vector.broadcast %cst_38 : f32 to vector<4x64xf32>
    %86 = arith.cmpf ogt, %84, %85 : vector<4x64xf32>
    %cst_39 = arith.constant 2.000000e+01 : f32
    %87 = vector.broadcast %cst_39 : f32 to vector<4x64xf32>
    %88 = arith.minimumf %84, %87 : vector<4x64xf32>
    %89 = math.exp %88 : vector<4x64xf32>
    %90 = math.log1p %89 : vector<4x64xf32>
    %91 = arith.select %86, %84, %90 : vector<4x64xi1>, vector<4x64xf32>
    %cst_40 = arith.constant dense<0.000000e+00> : vector<4x16xf32>
    %92 = tpu.matmul %91, %5, %cst_40 {dimension_numbers = #tpu.dot_dimension_numbers<[1], [0], [0], [1], [0, 0, 1, 1], [], []>} : vector<4x64xf32>, vector<64x16xf32>, vector<4x16xf32> -> vector<4x16xf32>
    %93 = arith.addf %92, %14 : vector<4x16xf32>
    %cst_41 = arith.constant 5.000000e-01 : f32
    %94 = vector.broadcast %cst_41 : f32 to vector<4x16xf32>
    %95 = arith.mulf %94, %93 : vector<4x16xf32>
    %96 = arith.addf %15, %95 : vector<4x16xf32>
    %cst_42 = arith.constant dense<0.000000e+00> : vector<4x64xf32>
    %97 = tpu.matmul %96, %1, %cst_42 {dimension_numbers = #tpu.dot_dimension_numbers<[1], [0], [0], [1], [0, 0, 1, 1], [], []>} : vector<4x16xf32>, vector<16x64xf32>, vector<4x64xf32> -> vector<4x64xf32>
    %98 = arith.addf %97, %27 : vector<4x64xf32>
    %cst_43 = arith.constant 2.000000e+01 : f32
    %99 = vector.broadcast %cst_43 : f32 to vector<4x64xf32>
    %100 = arith.cmpf ogt, %98, %99 : vector<4x64xf32>
    %cst_44 = arith.constant 2.000000e+01 : f32
    %101 = vector.broadcast %cst_44 : f32 to vector<4x64xf32>
    %102 = arith.minimumf %98, %101 : vector<4x64xf32>
    %103 = math.exp %102 : vector<4x64xf32>
    %104 = math.log1p %103 : vector<4x64xf32>
    %105 = arith.select %100, %98, %104 : vector<4x64xi1>, vector<4x64xf32>
    %cst_45 = arith.constant dense<0.000000e+00> : vector<4x64xf32>
    %106 = tpu.matmul %105, %3, %cst_45 {dimension_numbers = #tpu.dot_dimension_numbers<[1], [0], [0], [1], [0, 0, 1, 1], [], []>} : vector<4x64xf32>, vector<64x64xf32>, vector<4x64xf32> -> vector<4x64xf32>
    %107 = arith.addf %106, %12 : vector<4x64xf32>
    %cst_46 = arith.constant 2.000000e+01 : f32
    %108 = vector.broadcast %cst_46 : f32 to vector<4x64xf32>
    %109 = arith.cmpf ogt, %107, %108 : vector<4x64xf32>
    %cst_47 = arith.constant 2.000000e+01 : f32
    %110 = vector.broadcast %cst_47 : f32 to vector<4x64xf32>
    %111 = arith.minimumf %107, %110 : vector<4x64xf32>
    %112 = math.exp %111 : vector<4x64xf32>
    %113 = math.log1p %112 : vector<4x64xf32>
    %114 = arith.select %109, %107, %113 : vector<4x64xi1>, vector<4x64xf32>
    %cst_48 = arith.constant dense<0.000000e+00> : vector<4x16xf32>
    %115 = tpu.matmul %114, %5, %cst_48 {dimension_numbers = #tpu.dot_dimension_numbers<[1], [0], [0], [1], [0, 0, 1, 1], [], []>} : vector<4x64xf32>, vector<64x16xf32>, vector<4x16xf32> -> vector<4x16xf32>
    %116 = arith.addf %115, %14 : vector<4x16xf32>
    %117 = arith.addf %70, %93 : vector<4x16xf32>
    %cst_49 = arith.constant 2.000000e+00 : f32
    %118 = vector.broadcast %cst_49 : f32 to vector<4x16xf32>
    %119 = arith.mulf %118, %117 : vector<4x16xf32>
    %120 = arith.addf %47, %119 : vector<4x16xf32>
    %121 = arith.addf %120, %116 : vector<4x16xf32>
    %cst_50 = arith.constant 0.0833333358 : f32
    %122 = vector.broadcast %cst_50 : f32 to vector<4x16xf32>
    %123 = arith.mulf %122, %121 : vector<4x16xf32>
    %124 = arith.addf %15, %123 : vector<4x16xf32>
    %c1_i32 = arith.constant 1 : i32
    %125 = arith.sitofp %c1_i32 : i32 to f32
    %cst_51 = arith.constant 5.000000e-01 : f32
    %126 = arith.mulf %125, %cst_51 : f32
    %cst_52 = arith.constant 0.000000e+00 : f32
    %127 = arith.addf %cst_52, %126 : f32
    %128 = vector.broadcast %127 : f32 to vector<4x64xf32>
    %129 = arith.mulf %128, %8 : vector<4x64xf32>
    %130 = arith.addf %129, %10 : vector<4x64xf32>
    %cst_53 = arith.constant 2.500000e-01 : f32
    %131 = vector.broadcast %cst_53 : f32 to vector<4x64xf32>
    %132 = arith.mulf %131, %8 : vector<4x64xf32>
    %133 = arith.addf %130, %132 : vector<4x64xf32>
    %cst_54 = arith.constant 5.000000e-01 : f32
    %134 = vector.broadcast %cst_54 : f32 to vector<4x64xf32>
    %135 = arith.mulf %134, %8 : vector<4x64xf32>
    %136 = arith.addf %130, %135 : vector<4x64xf32>
    %cst_55 = arith.constant dense<0.000000e+00> : vector<4x64xf32>
    %137 = tpu.matmul %124, %1, %cst_55 {dimension_numbers = #tpu.dot_dimension_numbers<[1], [0], [0], [1], [0, 0, 1, 1], [], []>} : vector<4x16xf32>, vector<16x64xf32>, vector<4x64xf32> -> vector<4x64xf32>
    %138 = arith.addf %137, %130 : vector<4x64xf32>
    %cst_56 = arith.constant 2.000000e+01 : f32
    %139 = vector.broadcast %cst_56 : f32 to vector<4x64xf32>
    %140 = arith.cmpf ogt, %138, %139 : vector<4x64xf32>
    %cst_57 = arith.constant 2.000000e+01 : f32
    %141 = vector.broadcast %cst_57 : f32 to vector<4x64xf32>
    %142 = arith.minimumf %138, %141 : vector<4x64xf32>
    %143 = math.exp %142 : vector<4x64xf32>
    %144 = math.log1p %143 : vector<4x64xf32>
    %145 = arith.select %140, %138, %144 : vector<4x64xi1>, vector<4x64xf32>
    %cst_58 = arith.constant dense<0.000000e+00> : vector<4x64xf32>
    %146 = tpu.matmul %145, %3, %cst_58 {dimension_numbers = #tpu.dot_dimension_numbers<[1], [0], [0], [1], [0, 0, 1, 1], [], []>} : vector<4x64xf32>, vector<64x64xf32>, vector<4x64xf32> -> vector<4x64xf32>
    %147 = arith.addf %146, %12 : vector<4x64xf32>
    %cst_59 = arith.constant 2.000000e+01 : f32
    %148 = vector.broadcast %cst_59 : f32 to vector<4x64xf32>
    %149 = arith.cmpf ogt, %147, %148 : vector<4x64xf32>
    %cst_60 = arith.constant 2.000000e+01 : f32
    %150 = vector.broadcast %cst_60 : f32 to vector<4x64xf32>
    %151 = arith.minimumf %147, %150 : vector<4x64xf32>
    %152 = math.exp %151 : vector<4x64xf32>
    %153 = math.log1p %152 : vector<4x64xf32>
    %154 = arith.select %149, %147, %153 : vector<4x64xi1>, vector<4x64xf32>
    %cst_61 = arith.constant dense<0.000000e+00> : vector<4x16xf32>
    %155 = tpu.matmul %154, %5, %cst_61 {dimension_numbers = #tpu.dot_dimension_numbers<[1], [0], [0], [1], [0, 0, 1, 1], [], []>} : vector<4x64xf32>, vector<64x16xf32>, vector<4x16xf32> -> vector<4x16xf32>
    %156 = arith.addf %155, %14 : vector<4x16xf32>
    %cst_62 = arith.constant 2.500000e-01 : f32
    %157 = vector.broadcast %cst_62 : f32 to vector<4x16xf32>
    %158 = arith.mulf %157, %156 : vector<4x16xf32>
    %159 = arith.addf %124, %158 : vector<4x16xf32>
    %cst_63 = arith.constant dense<0.000000e+00> : vector<4x64xf32>
    %160 = tpu.matmul %159, %1, %cst_63 {dimension_numbers = #tpu.dot_dimension_numbers<[1], [0], [0], [1], [0, 0, 1, 1], [], []>} : vector<4x16xf32>, vector<16x64xf32>, vector<4x64xf32> -> vector<4x64xf32>
    %161 = arith.addf %160, %133 : vector<4x64xf32>
    %cst_64 = arith.constant 2.000000e+01 : f32
    %162 = vector.broadcast %cst_64 : f32 to vector<4x64xf32>
    %163 = arith.cmpf ogt, %161, %162 : vector<4x64xf32>
    %cst_65 = arith.constant 2.000000e+01 : f32
    %164 = vector.broadcast %cst_65 : f32 to vector<4x64xf32>
    %165 = arith.minimumf %161, %164 : vector<4x64xf32>
    %166 = math.exp %165 : vector<4x64xf32>
    %167 = math.log1p %166 : vector<4x64xf32>
    %168 = arith.select %163, %161, %167 : vector<4x64xi1>, vector<4x64xf32>
    %cst_66 = arith.constant dense<0.000000e+00> : vector<4x64xf32>
    %169 = tpu.matmul %168, %3, %cst_66 {dimension_numbers = #tpu.dot_dimension_numbers<[1], [0], [0], [1], [0, 0, 1, 1], [], []>} : vector<4x64xf32>, vector<64x64xf32>, vector<4x64xf32> -> vector<4x64xf32>
    %170 = arith.addf %169, %12 : vector<4x64xf32>
    %cst_67 = arith.constant 2.000000e+01 : f32
    %171 = vector.broadcast %cst_67 : f32 to vector<4x64xf32>
    %172 = arith.cmpf ogt, %170, %171 : vector<4x64xf32>
    %cst_68 = arith.constant 2.000000e+01 : f32
    %173 = vector.broadcast %cst_68 : f32 to vector<4x64xf32>
    %174 = arith.minimumf %170, %173 : vector<4x64xf32>
    %175 = math.exp %174 : vector<4x64xf32>
    %176 = math.log1p %175 : vector<4x64xf32>
    %177 = arith.select %172, %170, %176 : vector<4x64xi1>, vector<4x64xf32>
    %cst_69 = arith.constant dense<0.000000e+00> : vector<4x16xf32>
    %178 = tpu.matmul %177, %5, %cst_69 {dimension_numbers = #tpu.dot_dimension_numbers<[1], [0], [0], [1], [0, 0, 1, 1], [], []>} : vector<4x64xf32>, vector<64x16xf32>, vector<4x16xf32> -> vector<4x16xf32>
    %179 = arith.addf %178, %14 : vector<4x16xf32>
    %cst_70 = arith.constant 2.500000e-01 : f32
    %180 = vector.broadcast %cst_70 : f32 to vector<4x16xf32>
    %181 = arith.mulf %180, %179 : vector<4x16xf32>
    %182 = arith.addf %124, %181 : vector<4x16xf32>
    %cst_71 = arith.constant dense<0.000000e+00> : vector<4x64xf32>
    %183 = tpu.matmul %182, %1, %cst_71 {dimension_numbers = #tpu.dot_dimension_numbers<[1], [0], [0], [1], [0, 0, 1, 1], [], []>} : vector<4x16xf32>, vector<16x64xf32>, vector<4x64xf32> -> vector<4x64xf32>
    %184 = arith.addf %183, %133 : vector<4x64xf32>
    %cst_72 = arith.constant 2.000000e+01 : f32
    %185 = vector.broadcast %cst_72 : f32 to vector<4x64xf32>
    %186 = arith.cmpf ogt, %184, %185 : vector<4x64xf32>
    %cst_73 = arith.constant 2.000000e+01 : f32
    %187 = vector.broadcast %cst_73 : f32 to vector<4x64xf32>
    %188 = arith.minimumf %184, %187 : vector<4x64xf32>
    %189 = math.exp %188 : vector<4x64xf32>
    %190 = math.log1p %189 : vector<4x64xf32>
    %191 = arith.select %186, %184, %190 : vector<4x64xi1>, vector<4x64xf32>
    %cst_74 = arith.constant dense<0.000000e+00> : vector<4x64xf32>
    %192 = tpu.matmul %191, %3, %cst_74 {dimension_numbers = #tpu.dot_dimension_numbers<[1], [0], [0], [1], [0, 0, 1, 1], [], []>} : vector<4x64xf32>, vector<64x64xf32>, vector<4x64xf32> -> vector<4x64xf32>
    %193 = arith.addf %192, %12 : vector<4x64xf32>
    %cst_75 = arith.constant 2.000000e+01 : f32
    %194 = vector.broadcast %cst_75 : f32 to vector<4x64xf32>
    %195 = arith.cmpf ogt, %193, %194 : vector<4x64xf32>
    %cst_76 = arith.constant 2.000000e+01 : f32
    %196 = vector.broadcast %cst_76 : f32 to vector<4x64xf32>
    %197 = arith.minimumf %193, %196 : vector<4x64xf32>
    %198 = math.exp %197 : vector<4x64xf32>
    %199 = math.log1p %198 : vector<4x64xf32>
    %200 = arith.select %195, %193, %199 : vector<4x64xi1>, vector<4x64xf32>
    %cst_77 = arith.constant dense<0.000000e+00> : vector<4x16xf32>
    %201 = tpu.matmul %200, %5, %cst_77 {dimension_numbers = #tpu.dot_dimension_numbers<[1], [0], [0], [1], [0, 0, 1, 1], [], []>} : vector<4x64xf32>, vector<64x16xf32>, vector<4x16xf32> -> vector<4x16xf32>
    %202 = arith.addf %201, %14 : vector<4x16xf32>
    %cst_78 = arith.constant 5.000000e-01 : f32
    %203 = vector.broadcast %cst_78 : f32 to vector<4x16xf32>
    %204 = arith.mulf %203, %202 : vector<4x16xf32>
    %205 = arith.addf %124, %204 : vector<4x16xf32>
    %cst_79 = arith.constant dense<0.000000e+00> : vector<4x64xf32>
    %206 = tpu.matmul %205, %1, %cst_79 {dimension_numbers = #tpu.dot_dimension_numbers<[1], [0], [0], [1], [0, 0, 1, 1], [], []>} : vector<4x16xf32>, vector<16x64xf32>, vector<4x64xf32> -> vector<4x64xf32>
    %207 = arith.addf %206, %136 : vector<4x64xf32>
    %cst_80 = arith.constant 2.000000e+01 : f32
    %208 = vector.broadcast %cst_80 : f32 to vector<4x64xf32>
    %209 = arith.cmpf ogt, %207, %208 : vector<4x64xf32>
    %cst_81 = arith.constant 2.000000e+01 : f32
    %210 = vector.broadcast %cst_81 : f32 to vector<4x64xf32>
    %211 = arith.minimumf %207, %210 : vector<4x64xf32>
    %212 = math.exp %211 : vector<4x64xf32>
    %213 = math.log1p %212 : vector<4x64xf32>
    %214 = arith.select %209, %207, %213 : vector<4x64xi1>, vector<4x64xf32>
    %cst_82 = arith.constant dense<0.000000e+00> : vector<4x64xf32>
    %215 = tpu.matmul %214, %3, %cst_82 {dimension_numbers = #tpu.dot_dimension_numbers<[1], [0], [0], [1], [0, 0, 1, 1], [], []>} : vector<4x64xf32>, vector<64x64xf32>, vector<4x64xf32> -> vector<4x64xf32>
    %216 = arith.addf %215, %12 : vector<4x64xf32>
    %cst_83 = arith.constant 2.000000e+01 : f32
    %217 = vector.broadcast %cst_83 : f32 to vector<4x64xf32>
    %218 = arith.cmpf ogt, %216, %217 : vector<4x64xf32>
    %cst_84 = arith.constant 2.000000e+01 : f32
    %219 = vector.broadcast %cst_84 : f32 to vector<4x64xf32>
    %220 = arith.minimumf %216, %219 : vector<4x64xf32>
    %221 = math.exp %220 : vector<4x64xf32>
    %222 = math.log1p %221 : vector<4x64xf32>
    %223 = arith.select %218, %216, %222 : vector<4x64xi1>, vector<4x64xf32>
    %cst_85 = arith.constant dense<0.000000e+00> : vector<4x16xf32>
    %224 = tpu.matmul %223, %5, %cst_85 {dimension_numbers = #tpu.dot_dimension_numbers<[1], [0], [0], [1], [0, 0, 1, 1], [], []>} : vector<4x64xf32>, vector<64x16xf32>, vector<4x16xf32> -> vector<4x16xf32>
    %225 = arith.addf %224, %14 : vector<4x16xf32>
    %226 = arith.addf %179, %202 : vector<4x16xf32>
    %cst_86 = arith.constant 2.000000e+00 : f32
    %227 = vector.broadcast %cst_86 : f32 to vector<4x16xf32>
    %228 = arith.mulf %227, %226 : vector<4x16xf32>
    %229 = arith.addf %156, %228 : vector<4x16xf32>
    %230 = arith.addf %229, %225 : vector<4x16xf32>
    %cst_87 = arith.constant 0.0833333358 : f32
    %231 = vector.broadcast %cst_87 : f32 to vector<4x16xf32>
    %232 = arith.mulf %231, %230 : vector<4x16xf32>
    %233 = arith.addf %124, %232 : vector<4x16xf32>
    %c2_i32 = arith.constant 2 : i32
    %c0_88 = arith.constant 0 : index
    %c0_89 = arith.constant 0 : index
    %234 = vector.load %arg9[%c0_88, %c0_89] : memref<4x16xf32, #tpu.memory_space<vmem>>, vector<4x16xf32>
    tpu.vector_store %arg9[%c0_88, %c0_89], %233 {strides = array<i32>} : memref<4x16xf32, #tpu.memory_space<vmem>>, vector<4x16xf32>,
    return
  }
  func.func @transform_0(%arg0: i32) -> (i32, i32) {
    %c0_i32 = arith.constant 0 : i32
    %c0_i32_0 = arith.constant 0 : i32
    return %arg0, %c0_i32 : i32, i32
  }
  func.func @transform_1(%arg0: i32) -> (i32, i32) {
    %c0_i32 = arith.constant 0 : i32
    %c0_i32_0 = arith.constant 0 : i32
    %c0_i32_1 = arith.constant 0 : i32
    return %c0_i32, %c0_i32_0 : i32, i32
  }
  func.func @transform_2(%arg0: i32) -> (i32, i32) {
    %c0_i32 = arith.constant 0 : i32
    %c0_i32_0 = arith.constant 0 : i32
    %c0_i32_1 = arith.constant 0 : i32
    return %c0_i32, %c0_i32_0 : i32, i32
  }
  func.func @transform_3(%arg0: i32) -> (i32, i32) {
    %c0_i32 = arith.constant 0 : i32
    %c0_i32_0 = arith.constant 0 : i32
    %c0_i32_1 = arith.constant 0 : i32
    return %c0_i32, %c0_i32_0 : i32, i32
  }
  func.func @transform_4(%arg0: i32) -> (i32, i32) {
    %c0_i32 = arith.constant 0 : i32
    %c0_i32_0 = arith.constant 0 : i32
    %c0_i32_1 = arith.constant 0 : i32
    return %c0_i32, %c0_i32_0 : i32, i32
  }
  func.func @transform_5(%arg0: i32) -> (i32, i32) {
    %c0_i32 = arith.constant 0 : i32
    %c0_i32_0 = arith.constant 0 : i32
    %c0_i32_1 = arith.constant 0 : i32
    return %c0_i32, %c0_i32_0 : i32, i32
  }
  func.func @transform_6(%arg0: i32) -> (i32, i32) {
    %c0_i32 = arith.constant 0 : i32
    %c0_i32_0 = arith.constant 0 : i32
    %c0_i32_1 = arith.constant 0 : i32
    return %c0_i32, %c0_i32_0 : i32, i32
  }
  func.func @transform_7(%arg0: i32) -> (i32, i32) {
    %c0_i32 = arith.constant 0 : i32
    %c0_i32_0 = arith.constant 0 : i32
    %c0_i32_1 = arith.constant 0 : i32
    return %c0_i32, %c0_i32_0 : i32, i32
  }
  func.func @transform_8(%arg0: i32) -> (i32, i32) {
    %c0_i32 = arith.constant 0 : i32
    %c0_i32_0 = arith.constant 0 : i32
    return %arg0, %c0_i32 : i32, i32
  }
}

</mosaic_0001>

<llo_original>
// kernel: additive_forward.1
$region0: #{additive_forward.1}
  #allocation0 [shape = 'u32[]', space=smem, size = 0x4, offset = 0x4, fixed_abs, tag = 'smem constant byte address 0x4 - core index']
  #allocation1 [shape = 'u32[144,128]{1,0:T(1,128)}', space=vmem, size = 0x12000, scoped, tag = 'internal scratch']
  %s0 = inlined_call_operand.vmem [shape: f32[4,16], index: 0, kind: input, shape index: {}, may-alias: {0,8}]
  %s1 = inlined_call_operand.vmem [shape: f32[1,64], index: 1, kind: input, shape index: {}]
  %s2 = inlined_call_operand.vmem [shape: f32[16,64], index: 2, kind: input, shape index: {}]
  %s3 = inlined_call_operand.vmem [shape: f32[1,64], index: 3, kind: input, shape index: {}]
  %s4 = inlined_call_operand.vmem [shape: f32[64,64], index: 4, kind: input, shape index: {}]
  %s5 = inlined_call_operand.vmem [shape: f32[1,64], index: 5, kind: input, shape index: {}]
  %s6 = inlined_call_operand.vmem [shape: f32[64,16], index: 6, kind: input, shape index: {}]
  %s7 = inlined_call_operand.vmem [shape: f32[1,16], index: 7, kind: input, shape index: {}]
  %s8 = inlined_call_operand.vmem [shape: f32[4,16], index: 8, kind: output, shape index: {}, may-alias: {0,8}]
  %s9 = sld [smem:[#allocation0]]
  $region42: #{additive_forward.1} parent=0
    _
  %s11 = ssub.s32 1, %s9
  %s12 = scalar_select 0, %s11, %s9
  // Predicated region
  $region2: #{additive_forward.1} parent=0 // pred_check
    _
  $region3: #{additive_forward.1} parent=0 // pred_check_branch
    %14 = sbr.rel (0) target = $region5
  $region4: #{additive_forward.1} parent=0 // pred_region
    _
  $region5: #{additive_forward.1} parent=0 // pred_fallthru
    _
  // Predicated region
  $region6: #{additive_forward.1} parent=0 // pred_check
    _
  $region7: #{additive_forward.1} parent=0 // pred_check_branch
    %16 = sbr.rel (0) target = $region9
  $region8: #{additive_forward.1} parent=0 // pred_region
    _
  $region9: #{additive_forward.1} parent=0 // pred_fallthru
    _
  // Predicated region
  $region10: #{additive_forward.1} parent=0 // pred_check
    _
  $region11: #{additive_forward.1} parent=0 // pred_check_branch
    %18 = sbr.rel (0) target = $region13
  $region12: #{additive_forward.1} parent=0 // pred_region
    _
  $region13: #{additive_forward.1} parent=0 // pred_fallthru
    _
  // Predicated region
  $region14: #{additive_forward.1} parent=0 // pred_check
    _
  $region15: #{additive_forward.1} parent=0 // pred_check_branch
    %20 = sbr.rel (0) target = $region17
  $region16: #{additive_forward.1} parent=0 // pred_region
    _
  $region17: #{additive_forward.1} parent=0 // pred_fallthru
    _
  // Predicated region
  $region18: #{additive_forward.1} parent=0 // pred_check
    _
  $region19: #{additive_forward.1} parent=0 // pred_check_branch
    %22 = sbr.rel (0) target = $region21
  $region20: #{additive_forward.1} parent=0 // pred_region
    _
  $region21: #{additive_forward.1} parent=0 // pred_fallthru
    _
  // Predicated region
  $region22: #{additive_forward.1} parent=0 // pred_check
    _
  $region23: #{additive_forward.1} parent=0 // pred_check_branch
    %24 = sbr.rel (0) target = $region25
  $region24: #{additive_forward.1} parent=0 // pred_region
    _
  $region25: #{additive_forward.1} parent=0 // pred_fallthru
    _
  // Predicated region
  $region26: #{additive_forward.1} parent=0 // pred_check
    _
  $region27: #{additive_forward.1} parent=0 // pred_check_branch
    %26 = sbr.rel (0) target = $region29
  $region28: #{additive_forward.1} parent=0 // pred_region
    _
  $region29: #{additive_forward.1} parent=0 // pred_fallthru
    _
  // Predicated region
  $region30: #{additive_forward.1} parent=0 // pred_check
    _
  $region31: #{additive_forward.1} parent=0 // pred_check_branch
    %28 = sbr.rel (0) target = $region33
  $region32: #{additive_forward.1} parent=0 // pred_region
    _
  $region33: #{additive_forward.1} parent=0 // pred_fallthru
    _
  %v29 = vld [vmem:[%s1] sm:$0x1]
  %v30 = vld [vmem:[%s2] sm:$0xff]
  %v31 = vld [vmem:[%s2 + $0x8] sm:$0xff]
  %v32 = vld [vmem:[%s3] sm:$0x1]
  %v33 = vld [vmem:[%s4] sm:$0xff]
  %v34 = vld [vmem:[%s4 + $0x8] sm:$0xff]
  %v35 = vld [vmem:[%s4 + $0x10] sm:$0xff]
  %v36 = vld [vmem:[%s4 + $0x18] sm:$0xff]
  %v37 = vld [vmem:[%s4 + $0x20] sm:$0xff]
  %v38 = vld [vmem:[%s4 + $0x28] sm:$0xff]
  %v39 = vld [vmem:[%s4 + $0x30] sm:$0xff]
  %v40 = vld [vmem:[%s4 + $0x38] sm:$0xff]
  %v41 = vld [vmem:[%s5] sm:$0x1]
  %v42 = vld [vmem:[%s6] sm:$0xff]
  %v43 = vld [vmem:[%s6 + $0x8] sm:$0xff]
  %v44 = vld [vmem:[%s6 + $0x10] sm:$0xff]
  %v45 = vld [vmem:[%s6 + $0x18] sm:$0xff]
  %v46 = vld [vmem:[%s6 + $0x20] sm:$0xff]
  %v47 = vld [vmem:[%s6 + $0x28] sm:$0xff]
  %v48 = vld [vmem:[%s6 + $0x30] sm:$0xff]
  %v49 = vld [vmem:[%s6 + $0x38] sm:$0xff]
  %v50 = vld [vmem:[%s7] sm:$0x1]
  %v52 = vlaneseq
  %v53 = vshrl.u32 %v52, 7
  %v54 = vsub.s32 0, %v53
  %v55 = vrot.slane %v29, %v54
  %v58 = vlaneseq
  %v59 = vshrl.u32 %v58, 7
  %v60 = vsub.s32 0, %v59
  %v61 = vrot.slane %v32, %v60
  %v64 = vlaneseq
  %v65 = vshrl.u32 %v64, 7
  %v66 = vsub.s32 0, %v65
  %v67 = vrot.slane %v41, %v66
  %v70 = vlaneseq
  %v71 = vshrl.u32 %v70, 7
  %v72 = vsub.s32 0, %v71
  %v73 = vrot.slane %v50, %v72
  %v75 = vld [vmem:[%s0] sm:$0xf]
  %v76 = vmul.f32 %v55, 0.0
  %v77 = vadd.f32 %v76, %v61
  %v78 = vmul.f32 %v55, 0.25
  %v79 = vadd.f32 %v77, %v78
  %v80 = vmul.f32 %v55, 0.5
  %v81 = vadd.f32 %v77, %v80
  %vm82 = vcmask 130048
  %v84 = vsel %vm82, %v75, 0
  %86 = vmatprep.subr.mxu0 0.0
  %87 = vmatpush1.msra.mxu0 0.0
  %88 = vmatprep.subr.mxu0 0.0
  %89 = vmatpush1.msra.mxu0 0.0
  %90 = vmatprep.subr.mxu0 0.0
  %91 = vmatpush1.msra.mxu0 0.0
  %92 = vmatprep.subr.mxu0 0.0
  %93 = vmatpush1.msra.mxu0 0.0
  %94 = vmatprep.subr.mxu0 0.0
  %95 = vmatpush1.msra.mxu0 0.0
  %96 = vmatprep.subr.mxu0 0.0
  %97 = vmatpush1.msra.mxu0 0.0
  %98 = vmatprep.subr.mxu0 0.0
  %99 = vmatpush1.msra.mxu0 0.0
  %100 = vmatprep.subr.mxu0 0.0
  %101 = vmatpush1.msra.mxu0 0.0
  %102 = vmatprep.subr.mxu0 0.0
  %103 = vmatpush1.msra.mxu0 0.0
  %104 = vmatprep.subr.mxu0 0.0
  %105 = vmatpush1.msra.mxu0 0.0
  %106 = vmatprep.subr.mxu0 0.0
  %107 = vmatpush1.msra.mxu0 0.0
  %108 = vmatprep.subr.mxu0 0.0
  %109 = vmatpush1.msra.mxu0 0.0
  %110 = vmatprep.subr.mxu0 0.0
  %111 = vmatpush1.msra.mxu0 0.0
  %112 = vmatprep.subr.mxu0 0.0
  %113 = vmatpush1.msra.mxu0 0.0
  %114 = vmatprep.subr.mxu0 0.0
  %115 = vmatpush1.msra.mxu0 %v31
  %116 = vmatprep.subr.mxu0 0.0
  %117 = vmatpush1.msra.mxu0 %v30
  %118 = vmatprep.subr.mxu0 0.0
  %119 = vmatpush2.msra.mxu0 0.0
  %120 = vmatprep.subr.mxu0 0.0
  %121 = vmatpush2.msra.mxu0 0.0
  %122 = vmatprep.subr.mxu0 0.0
  %123 = vmatpush2.msra.mxu0 0.0
  %124 = vmatprep.subr.mxu0 0.0
  %125 = vmatpush2.msra.mxu0 0.0
  %126 = vmatprep.subr.mxu0 0.0
  %127 = vmatpush2.msra.mxu0 0.0
  %128 = vmatprep.subr.mxu0 0.0
  %129 = vmatpush2.msra.mxu0 0.0
  %130 = vmatprep.subr.mxu0 0.0
  %131 = vmatpush2.msra.mxu0 0.0
  %132 = vmatprep.subr.mxu0 0.0
  %133 = vmatpush2.msra.mxu0 0.0
  %134 = vmatprep.subr.mxu0 0.0
  %135 = vmatpush2.msra.mxu0 0.0
  %136 = vmatprep.subr.mxu0 0.0
  %137 = vmatpush2.msra.mxu0 0.0
  %138 = vmatprep.subr.mxu0 0.0
  %139 = vmatpush2.msra.mxu0 0.0
  %140 = vmatprep.subr.mxu0 0.0
  %141 = vmatpush2.msra.mxu0 0.0
  %142 = vmatprep.subr.mxu0 0.0
  %143 = vmatpush2.msra.mxu0 0.0
  %144 = vmatprep.subr.mxu0 0.0
  %145 = vmatpush2.msra.mxu0 0.0
  %146 = vmatprep.subr.mxu0 0.0
  %147 = vmatpush2.msra.mxu0 0.0
  %148 = vmatprep.subr.mxu0 0.0
  %149 = vmatpush2.msra.mxu0 0.0
  %150 = vmatprep.mubr.f32.mxu0 0.0
  %151 = vmatmul.mubr.f32.gmra.mxu0 %v84
  %v152 = vpop.f32.mrf.mxu0
  %v153 = vadd.f32 %v77, %v152
  %v154 = vpop.f32.mrf.mxu0
  %155 = vdwg.mxu0
  %vm156 = vcmp.gt.f32.partialorder %v153, 20.0
  %v157 = vmin.f32 %v153, 20.0
  %v158 = vmul.f32 %v157, 1.442695
  %v159 = vpow.pop %v158
  %v160 = vadd.f32 %v159, 1.0
  %v161 = vlog2.pop %v160
  %v162 = vmul.f32 %v161, 0.6931472
  %v163 = vmul.f32 -0.5, %v159
  %v164 = vadd.f32 %v163, 1.0
  %v165 = vmul.f32 %v164, %v159
  %v166 = vand.u32 2147483647, %v159
  %vm167 = vcmp.lt.f32.partialorder %v166, 0.0004427343
  %v168 = vsel %vm167, %v165, %v162
  %v169 = vsel %vm156, %v153, %v168
  %vm170 = vcmask 523264
  %v172 = vsel %vm170, %v169, 0
  %174 = vmatprep.subr.mxu0 0.0
  %175 = vmatpush1.msra.mxu0 0.0
  %176 = vmatprep.subr.mxu0 0.0
  %177 = vmatpush1.msra.mxu0 0.0
  %178 = vmatprep.subr.mxu0 0.0
  %179 = vmatpush1.msra.mxu0 0.0
  %180 = vmatprep.subr.mxu0 0.0
  %181 = vmatpush1.msra.mxu0 0.0
  %182 = vmatprep.subr.mxu0 0.0
  %183 = vmatpush1.msra.mxu0 0.0
  %184 = vmatprep.subr.mxu0 0.0
  %185 = vmatpush1.msra.mxu0 0.0
  %186 = vmatprep.subr.mxu0 0.0
  %187 = vmatpush1.msra.mxu0 0.0
  %188 = vmatprep.subr.mxu0 0.0
  %189 = vmatpush1.msra.mxu0 0.0
  %190 = vmatprep.subr.mxu0 0.0
  %191 = vmatpush1.msra.mxu0 %v40
  %192 = vmatprep.subr.mxu0 0.0
  %193 = vmatpush1.msra.mxu0 %v39
  %194 = vmatprep.subr.mxu0 0.0
  %195 = vmatpush1.msra.mxu0 %v38
  %196 = vmatprep.subr.mxu0 0.0
  %197 = vmatpush1.msra.mxu0 %v37
  %198 = vmatprep.subr.mxu0 0.0
  %199 = vmatpush1.msra.mxu0 %v36
  %200 = vmatprep.subr.mxu0 0.0
  %201 = vmatpush1.msra.mxu0 %v35
  %202 = vmatprep.subr.mxu0 0.0
  %203 = vmatpush1.msra.mxu0 %v34
  %204 = vmatprep.subr.mxu0 0.0
  %205 = vmatpush1.msra.mxu0 %v33
  %206 = vmatprep.subr.mxu0 0.0
  %207 = vmatpush2.msra.mxu0 0.0
  %208 = vmatprep.subr.mxu0 0.0
  %209 = vmatpush2.msra.mxu0 0.0
  %210 = vmatprep.subr.mxu0 0.0
  %211 = vmatpush2.msra.mxu0 0.0
  %212 = vmatprep.subr.mxu0 0.0
  %213 = vmatpush2.msra.mxu0 0.0
  %214 = vmatprep.subr.mxu0 0.0
  %215 = vmatpush2.msra.mxu0 0.0
  %216 = vmatprep.subr.mxu0 0.0
  %217 = vmatpush2.msra.mxu0 0.0
  %218 = vmatprep.subr.mxu0 0.0
  %219 = vmatpush2.msra.mxu0 0.0
  %220 = vmatprep.subr.mxu0 0.0
  %221 = vmatpush2.msra.mxu0 0.0
  %222 = vmatprep.subr.mxu0 0.0
  %223 = vmatpush2.msra.mxu0 0.0
  %224 = vmatprep.subr.mxu0 0.0
  %225 = vmatpush2.msra.mxu0 0.0
  %226 = vmatprep.subr.mxu0 0.0
  %227 = vmatpush2.msra.mxu0 0.0
  %228 = vmatprep.subr.mxu0 0.0
  %229 = vmatpush2.msra.mxu0 0.0
  %230 = vmatprep.subr.mxu0 0.0
  %231 = vmatpush2.msra.mxu0 0.0
  %232 = vmatprep.subr.mxu0 0.0
  %233 = vmatpush2.msra.mxu0 0.0
  %234 = vmatprep.subr.mxu0 0.0
  %235 = vmatpush2.msra.mxu0 0.0
  %236 = vmatprep.subr.mxu0 0.0
  %237 = vmatpush2.msra.mxu0 0.0
  %238 = vmatprep.mubr.f32.mxu0 0.0
  %239 = vmatmul.mubr.f32.gmra.mxu0 %v172
  %v240 = vpop.f32.mrf.mxu0
  %v241 = vadd.f32 %v67, %v240
  %v242 = vpop.f32.mrf.mxu0
  %243 = vdwg.mxu0
  %vm244 = vcmp.gt.f32.partialorder %v241, 20.0
  %v245 = vmin.f32 %v241, 20.0
  %v246 = vmul.f32 %v245, 1.442695
  %v247 = vpow.pop %v246
  %v248 = vadd.f32 %v247, 1.0
  %v249 = vlog2.pop %v248
  %v250 = vmul.f32 %v249, 0.6931472
  %v251 = vmul.f32 -0.5, %v247
  %v252 = vadd.f32 %v251, 1.0
  %v253 = vmul.f32 %v252, %v247
  %v254 = vand.u32 2147483647, %v247
  %vm255 = vcmp.lt.f32.partialorder %v254, 0.0004427343
  %v256 = vsel %vm255, %v253, %v250
  %v257 = vsel %vm244, %v241, %v256
  %v259 = vsel %vm170, %v257, 0
  %261 = vmatprep.subr.mxu0 0.0
  %262 = vmatpush1.msra.mxu0 0.0
  %263 = vmatprep.subr.mxu0 0.0
  %264 = vmatpush1.msra.mxu0 0.0
  %265 = vmatprep.subr.mxu0 0.0
  %266 = vmatpush1.msra.mxu0 0.0
  %267 = vmatprep.subr.mxu0 0.0
  %268 = vmatpush1.msra.mxu0 0.0
  %269 = vmatprep.subr.mxu0 0.0
  %270 = vmatpush1.msra.mxu0 0.0
  %271 = vmatprep.subr.mxu0 0.0
  %272 = vmatpush1.msra.mxu0 0.0
  %273 = vmatprep.subr.mxu0 0.0
  %274 = vmatpush1.msra.mxu0 0.0
  %275 = vmatprep.subr.mxu0 0.0
  %276 = vmatpush1.msra.mxu0 0.0
  %277 = vmatprep.subr.mxu0 0.0
  %278 = vmatpush1.msra.mxu0 %v49
  %279 = vmatprep.subr.mxu0 0.0
  %280 = vmatpush1.msra.mxu0 %v48
  %281 = vmatprep.subr.mxu0 0.0
  %282 = vmatpush1.msra.mxu0 %v47
  %283 = vmatprep.subr.mxu0 0.0
  %284 = vmatpush1.msra.mxu0 %v46
  %285 = vmatprep.subr.mxu0 0.0
  %286 = vmatpush1.msra.mxu0 %v45
  %287 = vmatprep.subr.mxu0 0.0
  %288 = vmatpush1.msra.mxu0 %v44
  %289 = vmatprep.subr.mxu0 0.0
  %290 = vmatpush1.msra.mxu0 %v43
  %291 = vmatprep.subr.mxu0 0.0
  %292 = vmatpush1.msra.mxu0 %v42
  %293 = vmatprep.subr.mxu0 0.0
  %294 = vmatpush2.msra.mxu0 0.0
  %295 = vmatprep.subr.mxu0 0.0
  %296 = vmatpush2.msra.mxu0 0.0
  %297 = vmatprep.subr.mxu0 0.0
  %298 = vmatpush2.msra.mxu0 0.0
  %299 = vmatprep.subr.mxu0 0.0
  %300 = vmatpush2.msra.mxu0 0.0
  %301 = vmatprep.subr.mxu0 0.0
  %302 = vmatpush2.msra.mxu0 0.0
  %303 = vmatprep.subr.mxu0 0.0
  %304 = vmatpush2.msra.mxu0 0.0
  %305 = vmatprep.subr.mxu0 0.0
  %306 = vmatpush2.msra.mxu0 0.0
  %307 = vmatprep.subr.mxu0 0.0
  %308 = vmatpush2.msra.mxu0 0.0
  %309 = vmatprep.subr.mxu0 0.0
  %310 = vmatpush2.msra.mxu0 0.0
  %311 = vmatprep.subr.mxu0 0.0
  %312 = vmatpush2.msra.mxu0 0.0
  %313 = vmatprep.subr.mxu0 0.0
  %314 = vmatpush2.msra.mxu0 0.0
  %315 = vmatprep.subr.mxu0 0.0
  %316 = vmatpush2.msra.mxu0 0.0
  %317 = vmatprep.subr.mxu0 0.0
  %318 = vmatpush2.msra.mxu0 0.0
  %319 = vmatprep.subr.mxu0 0.0
  %320 = vmatpush2.msra.mxu0 0.0
  %321 = vmatprep.subr.mxu0 0.0
  %322 = vmatpush2.msra.mxu0 0.0
  %323 = vmatprep.subr.mxu0 0.0
  %324 = vmatpush2.msra.mxu0 0.0
  %325 = vmatprep.mubr.f32.mxu0 0.0
  %326 = vmatmul.mubr.f32.gmra.mxu0 %v259
  %v327 = vpop.f32.mrf.mxu0
  %v328 = vadd.f32 %v73, %v327
  %v329 = vpop.f32.mrf.mxu0
  %330 = vdwg.mxu0
  %v331 = vmul.f32 %v328, 0.25
  %v332 = vadd.f32 %v75, %v331
  %v334 = vsel %vm82, %v332, 0
  %336 = vmatprep.subr.mxu0 0.0
  %337 = vmatpush1.msra.mxu0 0.0
  %338 = vmatprep.subr.mxu0 0.0
  %339 = vmatpush1.msra.mxu0 0.0
  %340 = vmatprep.subr.mxu0 0.0
  %341 = vmatpush1.msra.mxu0 0.0
  %342 = vmatprep.subr.mxu0 0.0
  %343 = vmatpush1.msra.mxu0 0.0
  %344 = vmatprep.subr.mxu0 0.0
  %345 = vmatpush1.msra.mxu0 0.0
  %346 = vmatprep.subr.mxu0 0.0
  %347 = vmatpush1.msra.mxu0 0.0
  %348 = vmatprep.subr.mxu0 0.0
  %349 = vmatpush1.msra.mxu0 0.0
  %350 = vmatprep.subr.mxu0 0.0
  %351 = vmatpush1.msra.mxu0 0.0
  %352 = vmatprep.subr.mxu0 0.0
  %353 = vmatpush1.msra.mxu0 0.0
  %354 = vmatprep.subr.mxu0 0.0
  %355 = vmatpush1.msra.mxu0 0.0
  %356 = vmatprep.subr.mxu0 0.0
  %357 = vmatpush1.msra.mxu0 0.0
  %358 = vmatprep.subr.mxu0 0.0
  %359 = vmatpush1.msra.mxu0 0.0
  %360 = vmatprep.subr.mxu0 0.0
  %361 = vmatpush1.msra.mxu0 0.0
  %362 = vmatprep.subr.mxu0 0.0
  %363 = vmatpush1.msra.mxu0 0.0
  %364 = vmatprep.subr.mxu0 0.0
  %365 = vmatpush1.msra.mxu0 %v31
  %366 = vmatprep.subr.mxu0 0.0
  %367 = vmatpush1.msra.mxu0 %v30
  %368 = vmatprep.subr.mxu0 0.0
  %369 = vmatpush2.msra.mxu0 0.0
  %370 = vmatprep.subr.mxu0 0.0
  %371 = vmatpush2.msra.mxu0 0.0
  %372 = vmatprep.subr.mxu0 0.0
  %373 = vmatpush2.msra.mxu0 0.0
  %374 = vmatprep.subr.mxu0 0.0
  %375 = vmatpush2.msra.mxu0 0.0
  %376 = vmatprep.subr.mxu0 0.0
  %377 = vmatpush2.msra.mxu0 0.0
  %378 = vmatprep.subr.mxu0 0.0
  %379 = vmatpush2.msra.mxu0 0.0
  %380 = vmatprep.subr.mxu0 0.0
  %381 = vmatpush2.msra.mxu0 0.0
  %382 = vmatprep.subr.mxu0 0.0
  %383 = vmatpush2.msra.mxu0 0.0
  %384 = vmatprep.subr.mxu0 0.0
  %385 = vmatpush2.msra.mxu0 0.0
  %386 = vmatprep.subr.mxu0 0.0
  %387 = vmatpush2.msra.mxu0 0.0
  %388 = vmatprep.subr.mxu0 0.0
  %389 = vmatpush2.msra.mxu0 0.0
  %390 = vmatprep.subr.mxu0 0.0
  %391 = vmatpush2.msra.mxu0 0.0
  %392 = vmatprep.subr.mxu0 0.0
  %393 = vmatpush2.msra.mxu0 0.0
  %394 = vmatprep.subr.mxu0 0.0
  %395 = vmatpush2.msra.mxu0 0.0
  %396 = vmatprep.subr.mxu0 0.0
  %397 = vmatpush2.msra.mxu0 0.0
  %398 = vmatprep.subr.mxu0 0.0
  %399 = vmatpush2.msra.mxu0 0.0
  %400 = vmatprep.mubr.f32.mxu0 0.0
  %401 = vmatmul.mubr.f32.gmra.mxu0 %v334
  %v402 = vpop.f32.mrf.mxu0
  %v403 = vadd.f32 %v79, %v402
  %v404 = vpop.f32.mrf.mxu0
  %405 = vdwg.mxu0
  %vm406 = vcmp.gt.f32.partialorder %v403, 20.0
  %v407 = vmin.f32 %v403, 20.0
  %v408 = vmul.f32 %v407, 1.442695
  %v409 = vpow.pop %v408
  %v410 = vadd.f32 %v409, 1.0
  %v411 = vlog2.pop %v410
  %v412 = vmul.f32 %v411, 0.6931472
  %v413 = vmul.f32 -0.5, %v409
  %v414 = vadd.f32 %v413, 1.0
  %v415 = vmul.f32 %v414, %v409
  %v416 = vand.u32 2147483647, %v409
  %vm417 = vcmp.lt.f32.partialorder %v416, 0.0004427343
  %v418 = vsel %vm417, %v415, %v412
  %v419 = vsel %vm406, %v403, %v418
  %v421 = vsel %vm170, %v419, 0
  %423 = vmatprep.subr.mxu0 0.0
  %424 = vmatpush1.msra.mxu0 0.0
  %425 = vmatprep.subr.mxu0 0.0
  %426 = vmatpush1.msra.mxu0 0.0
  %427 = vmatprep.subr.mxu0 0.0
  %428 = vmatpush1.msra.mxu0 0.0
  %429 = vmatprep.subr.mxu0 0.0
  %430 = vmatpush1.msra.mxu0 0.0
  %431 = vmatprep.subr.mxu0 0.0
  %432 = vmatpush1.msra.mxu0 0.0
  %433 = vmatprep.subr.mxu0 0.0
  %434 = vmatpush1.msra.mxu0 0.0
  %435 = vmatprep.subr.mxu0 0.0
  %436 = vmatpush1.msra.mxu0 0.0
  %437 = vmatprep.subr.mxu0 0.0
  %438 = vmatpush1.msra.mxu0 0.0
  %439 = vmatprep.subr.mxu0 0.0
  %440 = vmatpush1.msra.mxu0 %v40
  %441 = vmatprep.subr.mxu0 0.0
  %442 = vmatpush1.msra.mxu0 %v39
  %443 = vmatprep.subr.mxu0 0.0
  %444 = vmatpush1.msra.mxu0 %v38
  %445 = vmatprep.subr.mxu0 0.0
  %446 = vmatpush1.msra.mxu0 %v37
  %447 = vmatprep.subr.mxu0 0.0
  %448 = vmatpush1.msra.mxu0 %v36
  %449 = vmatprep.subr.mxu0 0.0
  %450 = vmatpush1.msra.mxu0 %v35
  %451 = vmatprep.subr.mxu0 0.0
  %452 = vmatpush1.msra.mxu0 %v34
  %453 = vmatprep.subr.mxu0 0.0
  %454 = vmatpush1.msra.mxu0 %v33
  %455 = vmatprep.subr.mxu0 0.0
  %456 = vmatpush2.msra.mxu0 0.0
  %457 = vmatprep.subr.mxu0 0.0
  %458 = vmatpush2.msra.mxu0 0.0
  %459 = vmatprep.subr.mxu0 0.0
  %460 = vmatpush2.msra.mxu0 0.0
  %461 = vmatprep.subr.mxu0 0.0
  %462 = vmatpush2.msra.mxu0 0.0
  %463 = vmatprep.subr.mxu0 0.0
  %464 = vmatpush2.msra.mxu0 0.0
  %465 = vmatprep.subr.mxu0 0.0
  %466 = vmatpush2.msra.mxu0 0.0
  %467 = vmatprep.subr.mxu0 0.0
  %468 = vmatpush2.msra.mxu0 0.0
  %469 = vmatprep.subr.mxu0 0.0
  %470 = vmatpush2.msra.mxu0 0.0
  %471 = vmatprep.subr.mxu0 0.0
  %472 = vmatpush2.msra.mxu0 0.0
  %473 = vmatprep.subr.mxu0 0.0
  %474 = vmatpush2.msra.mxu0 0.0
  %475 = vmatprep.subr.mxu0 0.0
  %476 = vmatpush2.msra.mxu0 0.0
  %477 = vmatprep.subr.mxu0 0.0
  %478 = vmatpush2.msra.mxu0 0.0
  %479 = vmatprep.subr.mxu0 0.0
  %480 = vmatpush2.msra.mxu0 0.0
  %481 = vmatprep.subr.mxu0 0.0
  %482 = vmatpush2.msra.mxu0 0.0
  %483 = vmatprep.subr.mxu0 0.0
  %484 = vmatpush2.msra.mxu0 0.0
  %485 = vmatprep.subr.mxu0 0.0
  %486 = vmatpush2.msra.mxu0 0.0
  %487 = vmatprep.mubr.f32.mxu0 0.0
  %488 = vmatmul.mubr.f32.gmra.mxu0 %v421
  %v489 = vpop.f32.mrf.mxu0
  %v490 = vadd.f32 %v67, %v489
  %v491 = vpop.f32.mrf.mxu0
  %492 = vdwg.mxu0
  %vm493 = vcmp.gt.f32.partialorder %v490, 20.0
  %v494 = vmin.f32 %v490, 20.0
  %v495 = vmul.f32 %v494, 1.442695
  %v496 = vpow.pop %v495
  %v497 = vadd.f32 %v496, 1.0
  %v498 = vlog2.pop %v497
  %v499 = vmul.f32 %v498, 0.6931472
  %v500 = vmul.f32 -0.5, %v496
  %v501 = vadd.f32 %v500, 1.0
  %v502 = vmul.f32 %v501, %v496
  %v503 = vand.u32 2147483647, %v496
  %vm504 = vcmp.lt.f32.partialorder %v503, 0.0004427343
  %v505 = vsel %vm504, %v502, %v499
  %v506 = vsel %vm493, %v490, %v505
  %v508 = vsel %vm170, %v506, 0
  %510 = vmatprep.subr.mxu0 0.0
  %511 = vmatpush1.msra.mxu0 0.0
  %512 = vmatprep.subr.mxu0 0.0
  %513 = vmatpush1.msra.mxu0 0.0
  %514 = vmatprep.subr.mxu0 0.0
  %515 = vmatpush1.msra.mxu0 0.0
  %516 = vmatprep.subr.mxu0 0.0
  %517 = vmatpush1.msra.mxu0 0.0
  %518 = vmatprep.subr.mxu0 0.0
  %519 = vmatpush1.msra.mxu0 0.0
  %520 = vmatprep.subr.mxu0 0.0
  %521 = vmatpush1.msra.mxu0 0.0
  %522 = vmatprep.subr.mxu0 0.0
  %523 = vmatpush1.msra.mxu0 0.0
  %524 = vmatprep.subr.mxu0 0.0
  %525 = vmatpush1.msra.mxu0 0.0
  %526 = vmatprep.subr.mxu0 0.0
  %527 = vmatpush1.msra.mxu0 %v49
  %528 = vmatprep.subr.mxu0 0.0
  %529 = vmatpush1.msra.mxu0 %v48
  %530 = vmatprep.subr.mxu0 0.0
  %531 = vmatpush1.msra.mxu0 %v47
  %532 = vmatprep.subr.mxu0 0.0
  %533 = vmatpush1.msra.mxu0 %v46
  %534 = vmatprep.subr.mxu0 0.0
  %535 = vmatpush1.msra.mxu0 %v45
  %536 = vmatprep.subr.mxu0 0.0
  %537 = vmatpush1.msra.mxu0 %v44
  %538 = vmatprep.subr.mxu0 0.0
  %539 = vmatpush1.msra.mxu0 %v43
  %540 = vmatprep.subr.mxu0 0.0
  %541 = vmatpush1.msra.mxu0 %v42
  %542 = vmatprep.subr.mxu0 0.0
  %543 = vmatpush2.msra.mxu0 0.0
  %544 = vmatprep.subr.mxu0 0.0
  %545 = vmatpush2.msra.mxu0 0.0
  %546 = vmatprep.subr.mxu0 0.0
  %547 = vmatpush2.msra.mxu0 0.0
  %548 = vmatprep.subr.mxu0 0.0
  %549 = vmatpush2.msra.mxu0 0.0
  %550 = vmatprep.subr.mxu0 0.0
  %551 = vmatpush2.msra.mxu0 0.0
  %552 = vmatprep.subr.mxu0 0.0
  %553 = vmatpush2.msra.mxu0 0.0
  %554 = vmatprep.subr.mxu0 0.0
  %555 = vmatpush2.msra.mxu0 0.0
  %556 = vmatprep.subr.mxu0 0.0
  %557 = vmatpush2.msra.mxu0 0.0
  %558 = vmatprep.subr.mxu0 0.0
  %559 = vmatpush2.msra.mxu0 0.0
  %560 = vmatprep.subr.mxu0 0.0
  %561 = vmatpush2.msra.mxu0 0.0
  %562 = vmatprep.subr.mxu0 0.0
  %563 = vmatpush2.msra.mxu0 0.0
  %564 = vmatprep.subr.mxu0 0.0
  %565 = vmatpush2.msra.mxu0 0.0
  %566 = vmatprep.subr.mxu0 0.0
  %567 = vmatpush2.msra.mxu0 0.0
  %568 = vmatprep.subr.mxu0 0.0
  %569 = vmatpush2.msra.mxu0 0.0
  %570 = vmatprep.subr.mxu0 0.0
  %571 = vmatpush2.msra.mxu0 0.0
  %572 = vmatprep.subr.mxu0 0.0
  %573 = vmatpush2.msra.mxu0 0.0
  %574 = vmatprep.mubr.f32.mxu0 0.0
  %575 = vmatmul.mubr.f32.gmra.mxu0 %v508
  %v576 = vpop.f32.mrf.mxu0
  %v577 = vadd.f32 %v73, %v576
  %v578 = vpop.f32.mrf.mxu0
  %579 = vdwg.mxu0
  %v580 = vmul.f32 %v577, 0.25
  %v581 = vadd.f32 %v75, %v580
  %v583 = vsel %vm82, %v581, 0
  %585 = vmatprep.subr.mxu0 0.0
  %586 = vmatpush1.msra.mxu0 0.0
  %587 = vmatprep.subr.mxu0 0.0
  %588 = vmatpush1.msra.mxu0 0.0
  %589 = vmatprep.subr.mxu0 0.0
  %590 = vmatpush1.msra.mxu0 0.0
  %591 = vmatprep.subr.mxu0 0.0
  %592 = vmatpush1.msra.mxu0 0.0
  %593 = vmatprep.subr.mxu0 0.0
  %594 = vmatpush1.msra.mxu0 0.0
  %595 = vmatprep.subr.mxu0 0.0
  %596 = vmatpush1.msra.mxu0 0.0
  %597 = vmatprep.subr.mxu0 0.0
  %598 = vmatpush1.msra.mxu0 0.0
  %599 = vmatprep.subr.mxu0 0.0
  %600 = vmatpush1.msra.mxu0 0.0
  %601 = vmatprep.subr.mxu0 0.0
  %602 = vmatpush1.msra.mxu0 0.0
  %603 = vmatprep.subr.mxu0 0.0
  %604 = vmatpush1.msra.mxu0 0.0
  %605 = vmatprep.subr.mxu0 0.0
  %606 = vmatpush1.msra.mxu0 0.0
  %607 = vmatprep.subr.mxu0 0.0
  %608 = vmatpush1.msra.mxu0 0.0
  %609 = vmatprep.subr.mxu0 0.0
  %610 = vmatpush1.msra.mxu0 0.0
  %611 = vmatprep.subr.mxu0 0.0
  %612 = vmatpush1.msra.mxu0 0.0
  %613 = vmatprep.subr.mxu0 0.0
  %614 = vmatpush1.msra.mxu0 %v31
  %615 = vmatprep.subr.mxu0 0.0
  %616 = vmatpush1.msra.mxu0 %v30
  %617 = vmatprep.subr.mxu0 0.0
  %618 = vmatpush2.msra.mxu0 0.0
  %619 = vmatprep.subr.mxu0 0.0
  %620 = vmatpush2.msra.mxu0 0.0
  %621 = vmatprep.subr.mxu0 0.0
  %622 = vmatpush2.msra.mxu0 0.0
  %623 = vmatprep.subr.mxu0 0.0
  %624 = vmatpush2.msra.mxu0 0.0
  %625 = vmatprep.subr.mxu0 0.0
  %626 = vmatpush2.msra.mxu0 0.0
  %627 = vmatprep.subr.mxu0 0.0
  %628 = vmatpush2.msra.mxu0 0.0
  %629 = vmatprep.subr.mxu0 0.0
  %630 = vmatpush2.msra.mxu0 0.0
  %631 = vmatprep.subr.mxu0 0.0
  %632 = vmatpush2.msra.mxu0 0.0
  %633 = vmatprep.subr.mxu0 0.0
  %634 = vmatpush2.msra.mxu0 0.0
  %635 = vmatprep.subr.mxu0 0.0
  %636 = vmatpush2.msra.mxu0 0.0
  %637 = vmatprep.subr.mxu0 0.0
  %638 = vmatpush2.msra.mxu0 0.0
  %639 = vmatprep.subr.mxu0 0.0
  %640 = vmatpush2.msra.mxu0 0.0
  %641 = vmatprep.subr.mxu0 0.0
  %642 = vmatpush2.msra.mxu0 0.0
  %643 = vmatprep.subr.mxu0 0.0
  %644 = vmatpush2.msra.mxu0 0.0
  %645 = vmatprep.subr.mxu0 0.0
  %646 = vmatpush2.msra.mxu0 0.0
  %647 = vmatprep.subr.mxu0 0.0
  %648 = vmatpush2.msra.mxu0 0.0
  %649 = vmatprep.mubr.f32.mxu0 0.0
  %650 = vmatmul.mubr.f32.gmra.mxu0 %v583
  %v651 = vpop.f32.mrf.mxu0
  %v652 = vadd.f32 %v79, %v651
  %v653 = vpop.f32.mrf.mxu0
  %654 = vdwg.mxu0
  %vm655 = vcmp.gt.f32.partialorder %v652, 20.0
  %v656 = vmin.f32 %v652, 20.0
  %v657 = vmul.f32 %v656, 1.442695
  %v658 = vpow.pop %v657
  %v659 = vadd.f32 %v658, 1.0
  %v660 = vlog2.pop %v659
  %v661 = vmul.f32 %v660, 0.6931472
  %v662 = vmul.f32 -0.5, %v658
  %v663 = vadd.f32 %v662, 1.0
  %v664 = vmul.f32 %v663, %v658
  %v665 = vand.u32 2147483647, %v658
  %vm666 = vcmp.lt.f32.partialorder %v665, 0.0004427343
  %v667 = vsel %vm666, %v664, %v661
  %v668 = vsel %vm655, %v652, %v667
  %v670 = vsel %vm170, %v668, 0
  %672 = vmatprep.subr.mxu0 0.0
  %673 = vmatpush1.msra.mxu0 0.0
  %674 = vmatprep.subr.mxu0 0.0
  %675 = vmatpush1.msra.mxu0 0.0
  %676 = vmatprep.subr.mxu0 0.0
  %677 = vmatpush1.msra.mxu0 0.0
  %678 = vmatprep.subr.mxu0 0.0
  %679 = vmatpush1.msra.mxu0 0.0
  %680 = vmatprep.subr.mxu0 0.0
  %681 = vmatpush1.msra.mxu0 0.0
  %682 = vmatprep.subr.mxu0 0.0
  %683 = vmatpush1.msra.mxu0 0.0
  %684 = vmatprep.subr.mxu0 0.0
  %685 = vmatpush1.msra.mxu0 0.0
  %686 = vmatprep.subr.mxu0 0.0
  %687 = vmatpush1.msra.mxu0 0.0
  %688 = vmatprep.subr.mxu0 0.0
  %689 = vmatpush1.msra.mxu0 %v40
  %690 = vmatprep.subr.mxu0 0.0
  %691 = vmatpush1.msra.mxu0 %v39
  %692 = vmatprep.subr.mxu0 0.0
  %693 = vmatpush1.msra.mxu0 %v38
  %694 = vmatprep.subr.mxu0 0.0
  %695 = vmatpush1.msra.mxu0 %v37
  %696 = vmatprep.subr.mxu0 0.0
  %697 = vmatpush1.msra.mxu0 %v36
  %698 = vmatprep.subr.mxu0 0.0
  %699 = vmatpush1.msra.mxu0 %v35
  %700 = vmatprep.subr.mxu0 0.0
  %701 = vmatpush1.msra.mxu0 %v34
  %702 = vmatprep.subr.mxu0 0.0
  %703 = vmatpush1.msra.mxu0 %v33
  %704 = vmatprep.subr.mxu0 0.0
  %705 = vmatpush2.msra.mxu0 0.0
  %706 = vmatprep.subr.mxu0 0.0
  %707 = vmatpush2.msra.mxu0 0.0
  %708 = vmatprep.subr.mxu0 0.0
  %709 = vmatpush2.msra.mxu0 0.0
  %710 = vmatprep.subr.mxu0 0.0
  %711 = vmatpush2.msra.mxu0 0.0
  %712 = vmatprep.subr.mxu0 0.0
  %713 = vmatpush2.msra.mxu0 0.0
  %714 = vmatprep.subr.mxu0 0.0
  %715 = vmatpush2.msra.mxu0 0.0
  %716 = vmatprep.subr.mxu0 0.0
  %717 = vmatpush2.msra.mxu0 0.0
  %718 = vmatprep.subr.mxu0 0.0
  %719 = vmatpush2.msra.mxu0 0.0
  %720 = vmatprep.subr.mxu0 0.0
  %721 = vmatpush2.msra.mxu0 0.0
  %722 = vmatprep.subr.mxu0 0.0
  %723 = vmatpush2.msra.mxu0 0.0
  %724 = vmatprep.subr.mxu0 0.0
  %725 = vmatpush2.msra.mxu0 0.0
  %726 = vmatprep.subr.mxu0 0.0
  %727 = vmatpush2.msra.mxu0 0.0
  %728 = vmatprep.subr.mxu0 0.0
  %729 = vmatpush2.msra.mxu0 0.0
  %730 = vmatprep.subr.mxu0 0.0
  %731 = vmatpush2.msra.mxu0 0.0
  %732 = vmatprep.subr.mxu0 0.0
  %733 = vmatpush2.msra.mxu0 0.0
  %734 = vmatprep.subr.mxu0 0.0
  %735 = vmatpush2.msra.mxu0 0.0
  %736 = vmatprep.mubr.f32.mxu0 0.0
  %737 = vmatmul.mubr.f32.gmra.mxu0 %v670
  %v738 = vpop.f32.mrf.mxu0
  %v739 = vadd.f32 %v67, %v738
  %v740 = vpop.f32.mrf.mxu0
  %741 = vdwg.mxu0
  %vm742 = vcmp.gt.f32.partialorder %v739, 20.0
  %v743 = vmin.f32 %v739, 20.0
  %v744 = vmul.f32 %v743, 1.442695
  %v745 = vpow.pop %v744
  %v746 = vadd.f32 %v745, 1.0
  %v747 = vlog2.pop %v746
  %v748 = vmul.f32 %v747, 0.6931472
  %v749 = vmul.f32 -0.5, %v745
  %v750 = vadd.f32 %v749, 1.0
  %v751 = vmul.f32 %v750, %v745
  %v752 = vand.u32 2147483647, %v745
  %vm753 = vcmp.lt.f32.partialorder %v752, 0.0004427343
  %v754 = vsel %vm753, %v751, %v748
  %v755 = vsel %vm742, %v739, %v754
  %v757 = vsel %vm170, %v755, 0
  %759 = vmatprep.subr.mxu0 0.0
  %760 = vmatpush1.msra.mxu0 0.0
  %761 = vmatprep.subr.mxu0 0.0
  %762 = vmatpush1.msra.mxu0 0.0
  %763 = vmatprep.subr.mxu0 0.0
  %764 = vmatpush1.msra.mxu0 0.0
  %765 = vmatprep.subr.mxu0 0.0
  %766 = vmatpush1.msra.mxu0 0.0
  %767 = vmatprep.subr.mxu0 0.0
  %768 = vmatpush1.msra.mxu0 0.0
  %769 = vmatprep.subr.mxu0 0.0
  %770 = vmatpush1.msra.mxu0 0.0
  %771 = vmatprep.subr.mxu0 0.0
  %772 = vmatpush1.msra.mxu0 0.0
  %773 = vmatprep.subr.mxu0 0.0
  %774 = vmatpush1.msra.mxu0 0.0
  %775 = vmatprep.subr.mxu0 0.0
  %776 = vmatpush1.msra.mxu0 %v49
  %777 = vmatprep.subr.mxu0 0.0
  %778 = vmatpush1.msra.mxu0 %v48
  %779 = vmatprep.subr.mxu0 0.0
  %780 = vmatpush1.msra.mxu0 %v47
  %781 = vmatprep.subr.mxu0 0.0
  %782 = vmatpush1.msra.mxu0 %v46
  %783 = vmatprep.subr.mxu0 0.0
  %784 = vmatpush1.msra.mxu0 %v45
  %785 = vmatprep.subr.mxu0 0.0
  %786 = vmatpush1.msra.mxu0 %v44
  %787 = vmatprep.subr.mxu0 0.0
  %788 = vmatpush1.msra.mxu0 %v43
  %789 = vmatprep.subr.mxu0 0.0
  %790 = vmatpush1.msra.mxu0 %v42
  %791 = vmatprep.subr.mxu0 0.0
  %792 = vmatpush2.msra.mxu0 0.0
  %793 = vmatprep.subr.mxu0 0.0
  %794 = vmatpush2.msra.mxu0 0.0
  %795 = vmatprep.subr.mxu0 0.0
  %796 = vmatpush2.msra.mxu0 0.0
  %797 = vmatprep.subr.mxu0 0.0
  %798 = vmatpush2.msra.mxu0 0.0
  %799 = vmatprep.subr.mxu0 0.0
  %800 = vmatpush2.msra.mxu0 0.0
  %801 = vmatprep.subr.mxu0 0.0
  %802 = vmatpush2.msra.mxu0 0.0
  %803 = vmatprep.subr.mxu0 0.0
  %804 = vmatpush2.msra.mxu0 0.0
  %805 = vmatprep.subr.mxu0 0.0
  %806 = vmatpush2.msra.mxu0 0.0
  %807 = vmatprep.subr.mxu0 0.0
  %808 = vmatpush2.msra.mxu0 0.0
  %809 = vmatprep.subr.mxu0 0.0
  %810 = vmatpush2.msra.mxu0 0.0
  %811 = vmatprep.subr.mxu0 0.0
  %812 = vmatpush2.msra.mxu0 0.0
  %813 = vmatprep.subr.mxu0 0.0
  %814 = vmatpush2.msra.mxu0 0.0
  %815 = vmatprep.subr.mxu0 0.0
  %816 = vmatpush2.msra.mxu0 0.0
  %817 = vmatprep.subr.mxu0 0.0
  %818 = vmatpush2.msra.mxu0 0.0
  %819 = vmatprep.subr.mxu0 0.0
  %820 = vmatpush2.msra.mxu0 0.0
  %821 = vmatprep.subr.mxu0 0.0
  %822 = vmatpush2.msra.mxu0 0.0
  %823 = vmatprep.mubr.f32.mxu0 0.0
  %824 = vmatmul.mubr.f32.gmra.mxu0 %v757
  %v825 = vpop.f32.mrf.mxu0
  %v826 = vadd.f32 %v73, %v825
  %v827 = vpop.f32.mrf.mxu0
  %828 = vdwg.mxu0
  %v829 = vmul.f32 %v826, 0.5
  %v830 = vadd.f32 %v75, %v829
  %v832 = vsel %vm82, %v830, 0
  %834 = vmatprep.subr.mxu0 0.0
  %835 = vmatpush1.msra.mxu0 0.0
  %836 = vmatprep.subr.mxu0 0.0
  %837 = vmatpush1.msra.mxu0 0.0
  %838 = vmatprep.subr.mxu0 0.0
  %839 = vmatpush1.msra.mxu0 0.0
  %840 = vmatprep.subr.mxu0 0.0
  %841 = vmatpush1.msra.mxu0 0.0
  %842 = vmatprep.subr.mxu0 0.0
  %843 = vmatpush1.msra.mxu0 0.0
  %844 = vmatprep.subr.mxu0 0.0
  %845 = vmatpush1.msra.mxu0 0.0
  %846 = vmatprep.subr.mxu0 0.0
  %847 = vmatpush1.msra.mxu0 0.0
  %848 = vmatprep.subr.mxu0 0.0
  %849 = vmatpush1.msra.mxu0 0.0
  %850 = vmatprep.subr.mxu0 0.0
  %851 = vmatpush1.msra.mxu0 0.0
  %852 = vmatprep.subr.mxu0 0.0
  %853 = vmatpush1.msra.mxu0 0.0
  %854 = vmatprep.subr.mxu0 0.0
  %855 = vmatpush1.msra.mxu0 0.0
  %856 = vmatprep.subr.mxu0 0.0
  %857 = vmatpush1.msra.mxu0 0.0
  %858 = vmatprep.subr.mxu0 0.0
  %859 = vmatpush1.msra.mxu0 0.0
  %860 = vmatprep.subr.mxu0 0.0
  %861 = vmatpush1.msra.mxu0 0.0
  %862 = vmatprep.subr.mxu0 0.0
  %863 = vmatpush1.msra.mxu0 %v31
  %864 = vmatprep.subr.mxu0 0.0
  %865 = vmatpush1.msra.mxu0 %v30
  %866 = vmatprep.subr.mxu0 0.0
  %867 = vmatpush2.msra.mxu0 0.0
  %868 = vmatprep.subr.mxu0 0.0
  %869 = vmatpush2.msra.mxu0 0.0
  %870 = vmatprep.subr.mxu0 0.0
  %871 = vmatpush2.msra.mxu0 0.0
  %872 = vmatprep.subr.mxu0 0.0
  %873 = vmatpush2.msra.mxu0 0.0
  %874 = vmatprep.subr.mxu0 0.0
  %875 = vmatpush2.msra.mxu0 0.0
  %876 = vmatprep.subr.mxu0 0.0
  %877 = vmatpush2.msra.mxu0 0.0
  %878 = vmatprep.subr.mxu0 0.0
  %879 = vmatpush2.msra.mxu0 0.0
  %880 = vmatprep.subr.mxu0 0.0
  %881 = vmatpush2.msra.mxu0 0.0
  %882 = vmatprep.subr.mxu0 0.0
  %883 = vmatpush2.msra.mxu0 0.0
  %884 = vmatprep.subr.mxu0 0.0
  %885 = vmatpush2.msra.mxu0 0.0
  %886 = vmatprep.subr.mxu0 0.0
  %887 = vmatpush2.msra.mxu0 0.0
  %888 = vmatprep.subr.mxu0 0.0
  %889 = vmatpush2.msra.mxu0 0.0
  %890 = vmatprep.subr.mxu0 0.0
  %891 = vmatpush2.msra.mxu0 0.0
  %892 = vmatprep.subr.mxu0 0.0
  %893 = vmatpush2.msra.mxu0 0.0
  %894 = vmatprep.subr.mxu0 0.0
  %895 = vmatpush2.msra.mxu0 0.0
  %896 = vmatprep.subr.mxu0 0.0
  %897 = vmatpush2.msra.mxu0 0.0
  %898 = vmatprep.mubr.f32.mxu0 0.0
  %899 = vmatmul.mubr.f32.gmra.mxu0 %v832
  %v900 = vpop.f32.mrf.mxu0
  %v901 = vadd.f32 %v81, %v900
  %v902 = vpop.f32.mrf.mxu0
  %903 = vdwg.mxu0
  %vm904 = vcmp.gt.f32.partialorder %v901, 20.0
  %v905 = vmin.f32 %v901, 20.0
  %v906 = vmul.f32 %v905, 1.442695
  %v907 = vpow.pop %v906
  %v908 = vadd.f32 %v907, 1.0
  %v909 = vlog2.pop %v908
  %v910 = vmul.f32 %v909, 0.6931472
  %v911 = vmul.f32 -0.5, %v907
  %v912 = vadd.f32 %v911, 1.0
  %v913 = vmul.f32 %v912, %v907
  %v914 = vand.u32 2147483647, %v907
  %vm915 = vcmp.lt.f32.partialorder %v914, 0.0004427343
  %v916 = vsel %vm915, %v913, %v910
  %v917 = vsel %vm904, %v901, %v916
  %v919 = vsel %vm170, %v917, 0
  %921 = vmatprep.subr.mxu0 0.0
  %922 = vmatpush1.msra.mxu0 0.0
  %923 = vmatprep.subr.mxu0 0.0
  %924 = vmatpush1.msra.mxu0 0.0
  %925 = vmatprep.subr.mxu0 0.0
  %926 = vmatpush1.msra.mxu0 0.0
  %927 = vmatprep.subr.mxu0 0.0
  %928 = vmatpush1.msra.mxu0 0.0
  %929 = vmatprep.subr.mxu0 0.0
  %930 = vmatpush1.msra.mxu0 0.0
  %931 = vmatprep.subr.mxu0 0.0
  %932 = vmatpush1.msra.mxu0 0.0
  %933 = vmatprep.subr.mxu0 0.0
  %934 = vmatpush1.msra.mxu0 0.0
  %935 = vmatprep.subr.mxu0 0.0
  %936 = vmatpush1.msra.mxu0 0.0
  %937 = vmatprep.subr.mxu0 0.0
  %938 = vmatpush1.msra.mxu0 %v40
  %939 = vmatprep.subr.mxu0 0.0
  %940 = vmatpush1.msra.mxu0 %v39
  %941 = vmatprep.subr.mxu0 0.0
  %942 = vmatpush1.msra.mxu0 %v38
  %943 = vmatprep.subr.mxu0 0.0
  %944 = vmatpush1.msra.mxu0 %v37
  %945 = vmatprep.subr.mxu0 0.0
  %946 = vmatpush1.msra.mxu0 %v36
  %947 = vmatprep.subr.mxu0 0.0
  %948 = vmatpush1.msra.mxu0 %v35
  %949 = vmatprep.subr.mxu0 0.0
  %950 = vmatpush1.msra.mxu0 %v34
  %951 = vmatprep.subr.mxu0 0.0
  %952 = vmatpush1.msra.mxu0 %v33
  %953 = vmatprep.subr.mxu0 0.0
  %954 = vmatpush2.msra.mxu0 0.0
  %955 = vmatprep.subr.mxu0 0.0
  %956 = vmatpush2.msra.mxu0 0.0
  %957 = vmatprep.subr.mxu0 0.0
  %958 = vmatpush2.msra.mxu0 0.0
  %959 = vmatprep.subr.mxu0 0.0
  %960 = vmatpush2.msra.mxu0 0.0
  %961 = vmatprep.subr.mxu0 0.0
  %962 = vmatpush2.msra.mxu0 0.0
  %963 = vmatprep.subr.mxu0 0.0
  %964 = vmatpush2.msra.mxu0 0.0
  %965 = vmatprep.subr.mxu0 0.0
  %966 = vmatpush2.msra.mxu0 0.0
  %967 = vmatprep.subr.mxu0 0.0
  %968 = vmatpush2.msra.mxu0 0.0
  %969 = vmatprep.subr.mxu0 0.0
  %970 = vmatpush2.msra.mxu0 0.0
  %971 = vmatprep.subr.mxu0 0.0
  %972 = vmatpush2.msra.mxu0 0.0
  %973 = vmatprep.subr.mxu0 0.0
  %974 = vmatpush2.msra.mxu0 0.0
  %975 = vmatprep.subr.mxu0 0.0
  %976 = vmatpush2.msra.mxu0 0.0
  %977 = vmatprep.subr.mxu0 0.0
  %978 = vmatpush2.msra.mxu0 0.0
  %979 = vmatprep.subr.mxu0 0.0
  %980 = vmatpush2.msra.mxu0 0.0
  %981 = vmatprep.subr.mxu0 0.0
  %982 = vmatpush2.msra.mxu0 0.0
  %983 = vmatprep.subr.mxu0 0.0
  %984 = vmatpush2.msra.mxu0 0.0
  %985 = vmatprep.mubr.f32.mxu0 0.0
  %986 = vmatmul.mubr.f32.gmra.mxu0 %v919
  %v987 = vpop.f32.mrf.mxu0
  %v988 = vadd.f32 %v67, %v987
  %v989 = vpop.f32.mrf.mxu0
  %990 = vdwg.mxu0
  %vm991 = vcmp.gt.f32.partialorder %v988, 20.0
  %v992 = vmin.f32 %v988, 20.0
  %v993 = vmul.f32 %v992, 1.442695
  %v994 = vpow.pop %v993
  %v995 = vadd.f32 %v994, 1.0
  %v996 = vlog2.pop %v995
  %v997 = vmul.f32 %v996, 0.6931472
  %v998 = vmul.f32 -0.5, %v994
  %v999 = vadd.f32 %v998, 1.0
  %v1000 = vmul.f32 %v999, %v994
  %v1001 = vand.u32 2147483647, %v994
  %vm1002 = vcmp.lt.f32.partialorder %v1001, 0.0004427343
  %v1003 = vsel %vm1002, %v1000, %v997
  %v1004 = vsel %vm991, %v988, %v1003
  %v1006 = vsel %vm170, %v1004, 0
  %1008 = vmatprep.subr.mxu0 0.0
  %1009 = vmatpush1.msra.mxu0 0.0
  %1010 = vmatprep.subr.mxu0 0.0
  %1011 = vmatpush1.msra.mxu0 0.0
  %1012 = vmatprep.subr.mxu0 0.0
  %1013 = vmatpush1.msra.mxu0 0.0
  %1014 = vmatprep.subr.mxu0 0.0
  %1015 = vmatpush1.msra.mxu0 0.0
  %1016 = vmatprep.subr.mxu0 0.0
  %1017 = vmatpush1.msra.mxu0 0.0
  %1018 = vmatprep.subr.mxu0 0.0
  %1019 = vmatpush1.msra.mxu0 0.0
  %1020 = vmatprep.subr.mxu0 0.0
  %1021 = vmatpush1.msra.mxu0 0.0
  %1022 = vmatprep.subr.mxu0 0.0
  %1023 = vmatpush1.msra.mxu0 0.0
  %1024 = vmatprep.subr.mxu0 0.0
  %1025 = vmatpush1.msra.mxu0 %v49
  %1026 = vmatprep.subr.mxu0 0.0
  %1027 = vmatpush1.msra.mxu0 %v48
  %1028 = vmatprep.subr.mxu0 0.0
  %1029 = vmatpush1.msra.mxu0 %v47
  %1030 = vmatprep.subr.mxu0 0.0
  %1031 = vmatpush1.msra.mxu0 %v46
  %1032 = vmatprep.subr.mxu0 0.0
  %1033 = vmatpush1.msra.mxu0 %v45
  %1034 = vmatprep.subr.mxu0 0.0
  %1035 = vmatpush1.msra.mxu0 %v44
  %1036 = vmatprep.subr.mxu0 0.0
  %1037 = vmatpush1.msra.mxu0 %v43
  %1038 = vmatprep.subr.mxu0 0.0
  %1039 = vmatpush1.msra.mxu0 %v42
  %1040 = vmatprep.subr.mxu0 0.0
  %1041 = vmatpush2.msra.mxu0 0.0
  %1042 = vmatprep.subr.mxu0 0.0
  %1043 = vmatpush2.msra.mxu0 0.0
  %1044 = vmatprep.subr.mxu0 0.0
  %1045 = vmatpush2.msra.mxu0 0.0
  %1046 = vmatprep.subr.mxu0 0.0
  %1047 = vmatpush2.msra.mxu0 0.0
  %1048 = vmatprep.subr.mxu0 0.0
  %1049 = vmatpush2.msra.mxu0 0.0
  %1050 = vmatprep.subr.mxu0 0.0
  %1051 = vmatpush2.msra.mxu0 0.0
  %1052 = vmatprep.subr.mxu0 0.0
  %1053 = vmatpush2.msra.mxu0 0.0
  %1054 = vmatprep.subr.mxu0 0.0
  %1055 = vmatpush2.msra.mxu0 0.0
  %1056 = vmatprep.subr.mxu0 0.0
  %1057 = vmatpush2.msra.mxu0 0.0
  %1058 = vmatprep.subr.mxu0 0.0
  %1059 = vmatpush2.msra.mxu0 0.0
  %1060 = vmatprep.subr.mxu0 0.0
  %1061 = vmatpush2.msra.mxu0 0.0
  %1062 = vmatprep.subr.mxu0 0.0
  %1063 = vmatpush2.msra.mxu0 0.0
  %1064 = vmatprep.subr.mxu0 0.0
  %1065 = vmatpush2.msra.mxu0 0.0
  %1066 = vmatprep.subr.mxu0 0.0
  %1067 = vmatpush2.msra.mxu0 0.0
  %1068 = vmatprep.subr.mxu0 0.0
  %1069 = vmatpush2.msra.mxu0 0.0
  %1070 = vmatprep.subr.mxu0 0.0
  %1071 = vmatpush2.msra.mxu0 0.0
  %1072 = vmatprep.mubr.f32.mxu0 0.0
  %1073 = vmatmul.mubr.f32.gmra.mxu0 %v1006
  %v1074 = vpop.f32.mrf.mxu0
  %v1075 = vadd.f32 %v73, %v1074
  %v1076 = vpop.f32.mrf.mxu0
  %1077 = vdwg.mxu0
  %v1078 = vadd.f32 %v577, %v826
  %v1079 = vmul.f32 %v1078, 2.0
  %v1080 = vadd.f32 %v328, %v1079
  %v1081 = vadd.f32 %v1080, %v1075
  %v1082 = vmul.f32 %v1081, 0.083333336
  %v1083 = vadd.f32 %v75, %v1082
  %v1084 = vadd.f32 %v80, %v61
  %v1085 = vadd.f32 %v1084, %v78
  %v1086 = vadd.f32 %v1084, %v80
  %v1088 = vsel %vm82, %v1083, 0
  %1090 = vmatprep.subr.mxu0 0.0
  %1091 = vmatpush1.msra.mxu0 0.0
  %1092 = vmatprep.subr.mxu0 0.0
  %1093 = vmatpush1.msra.mxu0 0.0
  %1094 = vmatprep.subr.mxu0 0.0
  %1095 = vmatpush1.msra.mxu0 0.0
  %1096 = vmatprep.subr.mxu0 0.0
  %1097 = vmatpush1.msra.mxu0 0.0
  %1098 = vmatprep.subr.mxu0 0.0
  %1099 = vmatpush1.msra.mxu0 0.0
  %1100 = vmatprep.subr.mxu0 0.0
  %1101 = vmatpush1.msra.mxu0 0.0
  %1102 = vmatprep.subr.mxu0 0.0
  %1103 = vmatpush1.msra.mxu0 0.0
  %1104 = vmatprep.subr.mxu0 0.0
  %1105 = vmatpush1.msra.mxu0 0.0
  %1106 = vmatprep.subr.mxu0 0.0
  %1107 = vmatpush1.msra.mxu0 0.0
  %1108 = vmatprep.subr.mxu0 0.0
  %1109 = vmatpush1.msra.mxu0 0.0
  %1110 = vmatprep.subr.mxu0 0.0
  %1111 = vmatpush1.msra.mxu0 0.0
  %1112 = vmatprep.subr.mxu0 0.0
  %1113 = vmatpush1.msra.mxu0 0.0
  %1114 = vmatprep.subr.mxu0 0.0
  %1115 = vmatpush1.msra.mxu0 0.0
  %1116 = vmatprep.subr.mxu0 0.0
  %1117 = vmatpush1.msra.mxu0 0.0
  %1118 = vmatprep.subr.mxu0 0.0
  %1119 = vmatpush1.msra.mxu0 %v31
  %1120 = vmatprep.subr.mxu0 0.0
  %1121 = vmatpush1.msra.mxu0 %v30
  %1122 = vmatprep.subr.mxu0 0.0
  %1123 = vmatpush2.msra.mxu0 0.0
  %1124 = vmatprep.subr.mxu0 0.0
  %1125 = vmatpush2.msra.mxu0 0.0
  %1126 = vmatprep.subr.mxu0 0.0
  %1127 = vmatpush2.msra.mxu0 0.0
  %1128 = vmatprep.subr.mxu0 0.0
  %1129 = vmatpush2.msra.mxu0 0.0
  %1130 = vmatprep.subr.mxu0 0.0
  %1131 = vmatpush2.msra.mxu0 0.0
  %1132 = vmatprep.subr.mxu0 0.0
  %1133 = vmatpush2.msra.mxu0 0.0
  %1134 = vmatprep.subr.mxu0 0.0
  %1135 = vmatpush2.msra.mxu0 0.0
  %1136 = vmatprep.subr.mxu0 0.0
  %1137 = vmatpush2.msra.mxu0 0.0
  %1138 = vmatprep.subr.mxu0 0.0
  %1139 = vmatpush2.msra.mxu0 0.0
  %1140 = vmatprep.subr.mxu0 0.0
  %1141 = vmatpush2.msra.mxu0 0.0
  %1142 = vmatprep.subr.mxu0 0.0
  %1143 = vmatpush2.msra.mxu0 0.0
  %1144 = vmatprep.subr.mxu0 0.0
  %1145 = vmatpush2.msra.mxu0 0.0
  %1146 = vmatprep.subr.mxu0 0.0
  %1147 = vmatpush2.msra.mxu0 0.0
  %1148 = vmatprep.subr.mxu0 0.0
  %1149 = vmatpush2.msra.mxu0 0.0
  %1150 = vmatprep.subr.mxu0 0.0
  %1151 = vmatpush2.msra.mxu0 0.0
  %1152 = vmatprep.subr.mxu0 0.0
  %1153 = vmatpush2.msra.mxu0 0.0
  %1154 = vmatprep.mubr.f32.mxu0 0.0
  %1155 = vmatmul.mubr.f32.gmra.mxu0 %v1088
  %v1156 = vpop.f32.mrf.mxu0
  %v1157 = vadd.f32 %v1084, %v1156
  %v1158 = vpop.f32.mrf.mxu0
  %1159 = vdwg.mxu0
  %vm1160 = vcmp.gt.f32.partialorder %v1157, 20.0
  %v1161 = vmin.f32 %v1157, 20.0
  %v1162 = vmul.f32 %v1161, 1.442695
  %v1163 = vpow.pop %v1162
  %v1164 = vadd.f32 %v1163, 1.0
  %v1165 = vlog2.pop %v1164
  %v1166 = vmul.f32 %v1165, 0.6931472
  %v1167 = vmul.f32 -0.5, %v1163
  %v1168 = vadd.f32 %v1167, 1.0
  %v1169 = vmul.f32 %v1168, %v1163
  %v1170 = vand.u32 2147483647, %v1163
  %vm1171 = vcmp.lt.f32.partialorder %v1170, 0.0004427343
  %v1172 = vsel %vm1171, %v1169, %v1166
  %v1173 = vsel %vm1160, %v1157, %v1172
  %v1175 = vsel %vm170, %v1173, 0
  %1177 = vmatprep.subr.mxu0 0.0
  %1178 = vmatpush1.msra.mxu0 0.0
  %1179 = vmatprep.subr.mxu0 0.0
  %1180 = vmatpush1.msra.mxu0 0.0
  %1181 = vmatprep.subr.mxu0 0.0
  %1182 = vmatpush1.msra.mxu0 0.0
  %1183 = vmatprep.subr.mxu0 0.0
  %1184 = vmatpush1.msra.mxu0 0.0
  %1185 = vmatprep.subr.mxu0 0.0
  %1186 = vmatpush1.msra.mxu0 0.0
  %1187 = vmatprep.subr.mxu0 0.0
  %1188 = vmatpush1.msra.mxu0 0.0
  %1189 = vmatprep.subr.mxu0 0.0
  %1190 = vmatpush1.msra.mxu0 0.0
  %1191 = vmatprep.subr.mxu0 0.0
  %1192 = vmatpush1.msra.mxu0 0.0
  %1193 = vmatprep.subr.mxu0 0.0
  %1194 = vmatpush1.msra.mxu0 %v40
  %1195 = vmatprep.subr.mxu0 0.0
  %1196 = vmatpush1.msra.mxu0 %v39
  %1197 = vmatprep.subr.mxu0 0.0
  %1198 = vmatpush1.msra.mxu0 %v38
  %1199 = vmatprep.subr.mxu0 0.0
  %1200 = vmatpush1.msra.mxu0 %v37
  %1201 = vmatprep.subr.mxu0 0.0
  %1202 = vmatpush1.msra.mxu0 %v36
  %1203 = vmatprep.subr.mxu0 0.0
  %1204 = vmatpush1.msra.mxu0 %v35
  %1205 = vmatprep.subr.mxu0 0.0
  %1206 = vmatpush1.msra.mxu0 %v34
  %1207 = vmatprep.subr.mxu0 0.0
  %1208 = vmatpush1.msra.mxu0 %v33
  %1209 = vmatprep.subr.mxu0 0.0
  %1210 = vmatpush2.msra.mxu0 0.0
  %1211 = vmatprep.subr.mxu0 0.0
  %1212 = vmatpush2.msra.mxu0 0.0
  %1213 = vmatprep.subr.mxu0 0.0
  %1214 = vmatpush2.msra.mxu0 0.0
  %1215 = vmatprep.subr.mxu0 0.0
  %1216 = vmatpush2.msra.mxu0 0.0
  %1217 = vmatprep.subr.mxu0 0.0
  %1218 = vmatpush2.msra.mxu0 0.0
  %1219 = vmatprep.subr.mxu0 0.0
  %1220 = vmatpush2.msra.mxu0 0.0
  %1221 = vmatprep.subr.mxu0 0.0
  %1222 = vmatpush2.msra.mxu0 0.0
  %1223 = vmatprep.subr.mxu0 0.0
  %1224 = vmatpush2.msra.mxu0 0.0
  %1225 = vmatprep.subr.mxu0 0.0
  %1226 = vmatpush2.msra.mxu0 0.0
  %1227 = vmatprep.subr.mxu0 0.0
  %1228 = vmatpush2.msra.mxu0 0.0
  %1229 = vmatprep.subr.mxu0 0.0
  %1230 = vmatpush2.msra.mxu0 0.0
  %1231 = vmatprep.subr.mxu0 0.0
  %1232 = vmatpush2.msra.mxu0 0.0
  %1233 = vmatprep.subr.mxu0 0.0
  %1234 = vmatpush2.msra.mxu0 0.0
  %1235 = vmatprep.subr.mxu0 0.0
  %1236 = vmatpush2.msra.mxu0 0.0
  %1237 = vmatprep.subr.mxu0 0.0
  %1238 = vmatpush2.msra.mxu0 0.0
  %1239 = vmatprep.subr.mxu0 0.0
  %1240 = vmatpush2.msra.mxu0 0.0
  %1241 = vmatprep.mubr.f32.mxu0 0.0
  %1242 = vmatmul.mubr.f32.gmra.mxu0 %v1175
  %v1243 = vpop.f32.mrf.mxu0
  %v1244 = vadd.f32 %v67, %v1243
  %v1245 = vpop.f32.mrf.mxu0
  %1246 = vdwg.mxu0
  %vm1247 = vcmp.gt.f32.partialorder %v1244, 20.0
  %v1248 = vmin.f32 %v1244, 20.0
  %v1249 = vmul.f32 %v1248, 1.442695
  %v1250 = vpow.pop %v1249
  %v1251 = vadd.f32 %v1250, 1.0
  %v1252 = vlog2.pop %v1251
  %v1253 = vmul.f32 %v1252, 0.6931472
  %v1254 = vmul.f32 -0.5, %v1250
  %v1255 = vadd.f32 %v1254, 1.0
  %v1256 = vmul.f32 %v1255, %v1250
  %v1257 = vand.u32 2147483647, %v1250
  %vm1258 = vcmp.lt.f32.partialorder %v1257, 0.0004427343
  %v1259 = vsel %vm1258, %v1256, %v1253
  %v1260 = vsel %vm1247, %v1244, %v1259
  %v1262 = vsel %vm170, %v1260, 0
  %1264 = vmatprep.subr.mxu0 0.0
  %1265 = vmatpush1.msra.mxu0 0.0
  %1266 = vmatprep.subr.mxu0 0.0
  %1267 = vmatpush1.msra.mxu0 0.0
  %1268 = vmatprep.subr.mxu0 0.0
  %1269 = vmatpush1.msra.mxu0 0.0
  %1270 = vmatprep.subr.mxu0 0.0
  %1271 = vmatpush1.msra.mxu0 0.0
  %1272 = vmatprep.subr.mxu0 0.0
  %1273 = vmatpush1.msra.mxu0 0.0
  %1274 = vmatprep.subr.mxu0 0.0
  %1275 = vmatpush1.msra.mxu0 0.0
  %1276 = vmatprep.subr.mxu0 0.0
  %1277 = vmatpush1.msra.mxu0 0.0
  %1278 = vmatprep.subr.mxu0 0.0
  %1279 = vmatpush1.msra.mxu0 0.0
  %1280 = vmatprep.subr.mxu0 0.0
  %1281 = vmatpush1.msra.mxu0 %v49
  %1282 = vmatprep.subr.mxu0 0.0
  %1283 = vmatpush1.msra.mxu0 %v48
  %1284 = vmatprep.subr.mxu0 0.0
  %1285 = vmatpush1.msra.mxu0 %v47
  %1286 = vmatprep.subr.mxu0 0.0
  %1287 = vmatpush1.msra.mxu0 %v46
  %1288 = vmatprep.subr.mxu0 0.0
  %1289 = vmatpush1.msra.mxu0 %v45
  %1290 = vmatprep.subr.mxu0 0.0
  %1291 = vmatpush1.msra.mxu0 %v44
  %1292 = vmatprep.subr.mxu0 0.0
  %1293 = vmatpush1.msra.mxu0 %v43
  %1294 = vmatprep.subr.mxu0 0.0
  %1295 = vmatpush1.msra.mxu0 %v42
  %1296 = vmatprep.subr.mxu0 0.0
  %1297 = vmatpush2.msra.mxu0 0.0
  %1298 = vmatprep.subr.mxu0 0.0
  %1299 = vmatpush2.msra.mxu0 0.0
  %1300 = vmatprep.subr.mxu0 0.0
  %1301 = vmatpush2.msra.mxu0 0.0
  %1302 = vmatprep.subr.mxu0 0.0
  %1303 = vmatpush2.msra.mxu0 0.0
  %1304 = vmatprep.subr.mxu0 0.0
  %1305 = vmatpush2.msra.mxu0 0.0
  %1306 = vmatprep.subr.mxu0 0.0
  %1307 = vmatpush2.msra.mxu0 0.0
  %1308 = vmatprep.subr.mxu0 0.0
  %1309 = vmatpush2.msra.mxu0 0.0
  %1310 = vmatprep.subr.mxu0 0.0
  %1311 = vmatpush2.msra.mxu0 0.0
  %1312 = vmatprep.subr.mxu0 0.0
  %1313 = vmatpush2.msra.mxu0 0.0
  %1314 = vmatprep.subr.mxu0 0.0
  %1315 = vmatpush2.msra.mxu0 0.0
  %1316 = vmatprep.subr.mxu0 0.0
  %1317 = vmatpush2.msra.mxu0 0.0
  %1318 = vmatprep.subr.mxu0 0.0
  %1319 = vmatpush2.msra.mxu0 0.0
  %1320 = vmatprep.subr.mxu0 0.0
  %1321 = vmatpush2.msra.mxu0 0.0
  %1322 = vmatprep.subr.mxu0 0.0
  %1323 = vmatpush2.msra.mxu0 0.0
  %1324 = vmatprep.subr.mxu0 0.0
  %1325 = vmatpush2.msra.mxu0 0.0
  %1326 = vmatprep.subr.mxu0 0.0
  %1327 = vmatpush2.msra.mxu0 0.0
  %1328 = vmatprep.mubr.f32.mxu0 0.0
  %1329 = vmatmul.mubr.f32.gmra.mxu0 %v1262
  %v1330 = vpop.f32.mrf.mxu0
  %v1331 = vadd.f32 %v73, %v1330
  %v1332 = vpop.f32.mrf.mxu0
  %1333 = vdwg.mxu0
  %v1334 = vmul.f32 %v1331, 0.25
  %v1335 = vadd.f32 %v1083, %v1334
  %v1337 = vsel %vm82, %v1335, 0
  %1339 = vmatprep.subr.mxu0 0.0
  %1340 = vmatpush1.msra.mxu0 0.0
  %1341 = vmatprep.subr.mxu0 0.0
  %1342 = vmatpush1.msra.mxu0 0.0
  %1343 = vmatprep.subr.mxu0 0.0
  %1344 = vmatpush1.msra.mxu0 0.0
  %1345 = vmatprep.subr.mxu0 0.0
  %1346 = vmatpush1.msra.mxu0 0.0
  %1347 = vmatprep.subr.mxu0 0.0
  %1348 = vmatpush1.msra.mxu0 0.0
  %1349 = vmatprep.subr.mxu0 0.0
  %1350 = vmatpush1.msra.mxu0 0.0
  %1351 = vmatprep.subr.mxu0 0.0
  %1352 = vmatpush1.msra.mxu0 0.0
  %1353 = vmatprep.subr.mxu0 0.0
  %1354 = vmatpush1.msra.mxu0 0.0
  %1355 = vmatprep.subr.mxu0 0.0
  %1356 = vmatpush1.msra.mxu0 0.0
  %1357 = vmatprep.subr.mxu0 0.0
  %1358 = vmatpush1.msra.mxu0 0.0
  %1359 = vmatprep.subr.mxu0 0.0
  %1360 = vmatpush1.msra.mxu0 0.0
  %1361 = vmatprep.subr.mxu0 0.0
  %1362 = vmatpush1.msra.mxu0 0.0
  %1363 = vmatprep.subr.mxu0 0.0
  %1364 = vmatpush1.msra.mxu0 0.0
  %1365 = vmatprep.subr.mxu0 0.0
  %1366 = vmatpush1.msra.mxu0 0.0
  %1367 = vmatprep.subr.mxu0 0.0
  %1368 = vmatpush1.msra.mxu0 %v31
  %1369 = vmatprep.subr.mxu0 0.0
  %1370 = vmatpush1.msra.mxu0 %v30
  %1371 = vmatprep.subr.mxu0 0.0
  %1372 = vmatpush2.msra.mxu0 0.0
  %1373 = vmatprep.subr.mxu0 0.0
  %1374 = vmatpush2.msra.mxu0 0.0
  %1375 = vmatprep.subr.mxu0 0.0
  %1376 = vmatpush2.msra.mxu0 0.0
  %1377 = vmatprep.subr.mxu0 0.0
  %1378 = vmatpush2.msra.mxu0 0.0
  %1379 = vmatprep.subr.mxu0 0.0
  %1380 = vmatpush2.msra.mxu0 0.0
  %1381 = vmatprep.subr.mxu0 0.0
  %1382 = vmatpush2.msra.mxu0 0.0
  %1383 = vmatprep.subr.mxu0 0.0
  %1384 = vmatpush2.msra.mxu0 0.0
  %1385 = vmatprep.subr.mxu0 0.0
  %1386 = vmatpush2.msra.mxu0 0.0
  %1387 = vmatprep.subr.mxu0 0.0
  %1388 = vmatpush2.msra.mxu0 0.0
  %1389 = vmatprep.subr.mxu0 0.0
  %1390 = vmatpush2.msra.mxu0 0.0
  %1391 = vmatprep.subr.mxu0 0.0
  %1392 = vmatpush2.msra.mxu0 0.0
  %1393 = vmatprep.subr.mxu0 0.0
  %1394 = vmatpush2.msra.mxu0 0.0
  %1395 = vmatprep.subr.mxu0 0.0
  %1396 = vmatpush2.msra.mxu0 0.0
  %1397 = vmatprep.subr.mxu0 0.0
  %1398 = vmatpush2.msra.mxu0 0.0
  %1399 = vmatprep.subr.mxu0 0.0
  %1400 = vmatpush2.msra.mxu0 0.0
  %1401 = vmatprep.subr.mxu0 0.0
  %1402 = vmatpush2.msra.mxu0 0.0
  %1403 = vmatprep.mubr.f32.mxu0 0.0
  %1404 = vmatmul.mubr.f32.gmra.mxu0 %v1337
  %v1405 = vpop.f32.mrf.mxu0
  %v1406 = vadd.f32 %v1085, %v1405
  %v1407 = vpop.f32.mrf.mxu0
  %1408 = vdwg.mxu0
  %vm1409 = vcmp.gt.f32.partialorder %v1406, 20.0
  %v1410 = vmin.f32 %v1406, 20.0
  %v1411 = vmul.f32 %v1410, 1.442695
  %v1412 = vpow.pop %v1411
  %v1413 = vadd.f32 %v1412, 1.0
  %v1414 = vlog2.pop %v1413
  %v1415 = vmul.f32 %v1414, 0.6931472
  %v1416 = vmul.f32 -0.5, %v1412
  %v1417 = vadd.f32 %v1416, 1.0
  %v1418 = vmul.f32 %v1417, %v1412
  %v1419 = vand.u32 2147483647, %v1412
  %vm1420 = vcmp.lt.f32.partialorder %v1419, 0.0004427343
  %v1421 = vsel %vm1420, %v1418, %v1415
  %v1422 = vsel %vm1409, %v1406, %v1421
  %v1424 = vsel %vm170, %v1422, 0
  %1426 = vmatprep.subr.mxu0 0.0
  %1427 = vmatpush1.msra.mxu0 0.0
  %1428 = vmatprep.subr.mxu0 0.0
  %1429 = vmatpush1.msra.mxu0 0.0
  %1430 = vmatprep.subr.mxu0 0.0
  %1431 = vmatpush1.msra.mxu0 0.0
  %1432 = vmatprep.subr.mxu0 0.0
  %1433 = vmatpush1.msra.mxu0 0.0
  %1434 = vmatprep.subr.mxu0 0.0
  %1435 = vmatpush1.msra.mxu0 0.0
  %1436 = vmatprep.subr.mxu0 0.0
  %1437 = vmatpush1.msra.mxu0 0.0
  %1438 = vmatprep.subr.mxu0 0.0
  %1439 = vmatpush1.msra.mxu0 0.0
  %1440 = vmatprep.subr.mxu0 0.0
  %1441 = vmatpush1.msra.mxu0 0.0
  %1442 = vmatprep.subr.mxu0 0.0
  %1443 = vmatpush1.msra.mxu0 %v40
  %1444 = vmatprep.subr.mxu0 0.0
  %1445 = vmatpush1.msra.mxu0 %v39
  %1446 = vmatprep.subr.mxu0 0.0
  %1447 = vmatpush1.msra.mxu0 %v38
  %1448 = vmatprep.subr.mxu0 0.0
  %1449 = vmatpush1.msra.mxu0 %v37
  %1450 = vmatprep.subr.mxu0 0.0
  %1451 = vmatpush1.msra.mxu0 %v36
  %1452 = vmatprep.subr.mxu0 0.0
  %1453 = vmatpush1.msra.mxu0 %v35
  %1454 = vmatprep.subr.mxu0 0.0
  %1455 = vmatpush1.msra.mxu0 %v34
  %1456 = vmatprep.subr.mxu0 0.0
  %1457 = vmatpush1.msra.mxu0 %v33
  %1458 = vmatprep.subr.mxu0 0.0
  %1459 = vmatpush2.msra.mxu0 0.0
  %1460 = vmatprep.subr.mxu0 0.0
  %1461 = vmatpush2.msra.mxu0 0.0
  %1462 = vmatprep.subr.mxu0 0.0
  %1463 = vmatpush2.msra.mxu0 0.0
  %1464 = vmatprep.subr.mxu0 0.0
  %1465 = vmatpush2.msra.mxu0 0.0
  %1466 = vmatprep.subr.mxu0 0.0
  %1467 = vmatpush2.msra.mxu0 0.0
  %1468 = vmatprep.subr.mxu0 0.0
  %1469 = vmatpush2.msra.mxu0 0.0
  %1470 = vmatprep.subr.mxu0 0.0
  %1471 = vmatpush2.msra.mxu0 0.0
  %1472 = vmatprep.subr.mxu0 0.0
  %1473 = vmatpush2.msra.mxu0 0.0
  %1474 = vmatprep.subr.mxu0 0.0
  %1475 = vmatpush2.msra.mxu0 0.0
  %1476 = vmatprep.subr.mxu0 0.0
  %1477 = vmatpush2.msra.mxu0 0.0
  %1478 = vmatprep.subr.mxu0 0.0
  %1479 = vmatpush2.msra.mxu0 0.0
  %1480 = vmatprep.subr.mxu0 0.0
  %1481 = vmatpush2.msra.mxu0 0.0
  %1482 = vmatprep.subr.mxu0 0.0
  %1483 = vmatpush2.msra.mxu0 0.0
  %1484 = vmatprep.subr.mxu0 0.0
  %1485 = vmatpush2.msra.mxu0 0.0
  %1486 = vmatprep.subr.mxu0 0.0
  %1487 = vmatpush2.msra.mxu0 0.0
  %1488 = vmatprep.subr.mxu0 0.0
  %1489 = vmatpush2.msra.mxu0 0.0
  %1490 = vmatprep.mubr.f32.mxu0 0.0
  %1491 = vmatmul.mubr.f32.gmra.mxu0 %v1424
  %v1492 = vpop.f32.mrf.mxu0
  %v1493 = vadd.f32 %v67, %v1492
  %v1494 = vpop.f32.mrf.mxu0
  %1495 = vdwg.mxu0
  %vm1496 = vcmp.gt.f32.partialorder %v1493, 20.0
  %v1497 = vmin.f32 %v1493, 20.0
  %v1498 = vmul.f32 %v1497, 1.442695
  %v1499 = vpow.pop %v1498
  %v1500 = vadd.f32 %v1499, 1.0
  %v1501 = vlog2.pop %v1500
  %v1502 = vmul.f32 %v1501, 0.6931472
  %v1503 = vmul.f32 -0.5, %v1499
  %v1504 = vadd.f32 %v1503, 1.0
  %v1505 = vmul.f32 %v1504, %v1499
  %v1506 = vand.u32 2147483647, %v1499
  %vm1507 = vcmp.lt.f32.partialorder %v1506, 0.0004427343
  %v1508 = vsel %vm1507, %v1505, %v1502
  %v1509 = vsel %vm1496, %v1493, %v1508
  %v1511 = vsel %vm170, %v1509, 0
  %1513 = vmatprep.subr.mxu0 0.0
  %1514 = vmatpush1.msra.mxu0 0.0
  %1515 = vmatprep.subr.mxu0 0.0
  %1516 = vmatpush1.msra.mxu0 0.0
  %1517 = vmatprep.subr.mxu0 0.0
  %1518 = vmatpush1.msra.mxu0 0.0
  %1519 = vmatprep.subr.mxu0 0.0
  %1520 = vmatpush1.msra.mxu0 0.0
  %1521 = vmatprep.subr.mxu0 0.0
  %1522 = vmatpush1.msra.mxu0 0.0
  %1523 = vmatprep.subr.mxu0 0.0
  %1524 = vmatpush1.msra.mxu0 0.0
  %1525 = vmatprep.subr.mxu0 0.0
  %1526 = vmatpush1.msra.mxu0 0.0
  %1527 = vmatprep.subr.mxu0 0.0
  %1528 = vmatpush1.msra.mxu0 0.0
  %1529 = vmatprep.subr.mxu0 0.0
  %1530 = vmatpush1.msra.mxu0 %v49
  %1531 = vmatprep.subr.mxu0 0.0
  %1532 = vmatpush1.msra.mxu0 %v48
  %1533 = vmatprep.subr.mxu0 0.0
  %1534 = vmatpush1.msra.mxu0 %v47
  %1535 = vmatprep.subr.mxu0 0.0
  %1536 = vmatpush1.msra.mxu0 %v46
  %1537 = vmatprep.subr.mxu0 0.0
  %1538 = vmatpush1.msra.mxu0 %v45
  %1539 = vmatprep.subr.mxu0 0.0
  %1540 = vmatpush1.msra.mxu0 %v44
  %1541 = vmatprep.subr.mxu0 0.0
  %1542 = vmatpush1.msra.mxu0 %v43
  %1543 = vmatprep.subr.mxu0 0.0
  %1544 = vmatpush1.msra.mxu0 %v42
  %1545 = vmatprep.subr.mxu0 0.0
  %1546 = vmatpush2.msra.mxu0 0.0
  %1547 = vmatprep.subr.mxu0 0.0
  %1548 = vmatpush2.msra.mxu0 0.0
  %1549 = vmatprep.subr.mxu0 0.0
  %1550 = vmatpush2.msra.mxu0 0.0
  %1551 = vmatprep.subr.mxu0 0.0
  %1552 = vmatpush2.msra.mxu0 0.0
  %1553 = vmatprep.subr.mxu0 0.0
  %1554 = vmatpush2.msra.mxu0 0.0
  %1555 = vmatprep.subr.mxu0 0.0
  %1556 = vmatpush2.msra.mxu0 0.0
  %1557 = vmatprep.subr.mxu0 0.0
  %1558 = vmatpush2.msra.mxu0 0.0
  %1559 = vmatprep.subr.mxu0 0.0
  %1560 = vmatpush2.msra.mxu0 0.0
  %1561 = vmatprep.subr.mxu0 0.0
  %1562 = vmatpush2.msra.mxu0 0.0
  %1563 = vmatprep.subr.mxu0 0.0
  %1564 = vmatpush2.msra.mxu0 0.0
  %1565 = vmatprep.subr.mxu0 0.0
  %1566 = vmatpush2.msra.mxu0 0.0
  %1567 = vmatprep.subr.mxu0 0.0
  %1568 = vmatpush2.msra.mxu0 0.0
  %1569 = vmatprep.subr.mxu0 0.0
  %1570 = vmatpush2.msra.mxu0 0.0
  %1571 = vmatprep.subr.mxu0 0.0
  %1572 = vmatpush2.msra.mxu0 0.0
  %1573 = vmatprep.subr.mxu0 0.0
  %1574 = vmatpush2.msra.mxu0 0.0
  %1575 = vmatprep.subr.mxu0 0.0
  %1576 = vmatpush2.msra.mxu0 0.0
  %1577 = vmatprep.mubr.f32.mxu0 0.0
  %1578 = vmatmul.mubr.f32.gmra.mxu0 %v1511
  %v1579 = vpop.f32.mrf.mxu0
  %v1580 = vadd.f32 %v73, %v1579
  %v1581 = vpop.f32.mrf.mxu0
  %1582 = vdwg.mxu0
  %v1583 = vmul.f32 %v1580, 0.25
  %v1584 = vadd.f32 %v1083, %v1583
  %v1586 = vsel %vm82, %v1584, 0
  %1588 = vmatprep.subr.mxu0 0.0
  %1589 = vmatpush1.msra.mxu0 0.0
  %1590 = vmatprep.subr.mxu0 0.0
  %1591 = vmatpush1.msra.mxu0 0.0
  %1592 = vmatprep.subr.mxu0 0.0
  %1593 = vmatpush1.msra.mxu0 0.0
  %1594 = vmatprep.subr.mxu0 0.0
  %1595 = vmatpush1.msra.mxu0 0.0
  %1596 = vmatprep.subr.mxu0 0.0
  %1597 = vmatpush1.msra.mxu0 0.0
  %1598 = vmatprep.subr.mxu0 0.0
  %1599 = vmatpush1.msra.mxu0 0.0
  %1600 = vmatprep.subr.mxu0 0.0
  %1601 = vmatpush1.msra.mxu0 0.0
  %1602 = vmatprep.subr.mxu0 0.0
  %1603 = vmatpush1.msra.mxu0 0.0
  %1604 = vmatprep.subr.mxu0 0.0
  %1605 = vmatpush1.msra.mxu0 0.0
  %1606 = vmatprep.subr.mxu0 0.0
  %1607 = vmatpush1.msra.mxu0 0.0
  %1608 = vmatprep.subr.mxu0 0.0
  %1609 = vmatpush1.msra.mxu0 0.0
  %1610 = vmatprep.subr.mxu0 0.0
  %1611 = vmatpush1.msra.mxu0 0.0
  %1612 = vmatprep.subr.mxu0 0.0
  %1613 = vmatpush1.msra.mxu0 0.0
  %1614 = vmatprep.subr.mxu0 0.0
  %1615 = vmatpush1.msra.mxu0 0.0
  %1616 = vmatprep.subr.mxu0 0.0
  %1617 = vmatpush1.msra.mxu0 %v31
  %1618 = vmatprep.subr.mxu0 0.0
  %1619 = vmatpush1.msra.mxu0 %v30
  %1620 = vmatprep.subr.mxu0 0.0
  %1621 = vmatpush2.msra.mxu0 0.0
  %1622 = vmatprep.subr.mxu0 0.0
  %1623 = vmatpush2.msra.mxu0 0.0
  %1624 = vmatprep.subr.mxu0 0.0
  %1625 = vmatpush2.msra.mxu0 0.0
  %1626 = vmatprep.subr.mxu0 0.0
  %1627 = vmatpush2.msra.mxu0 0.0
  %1628 = vmatprep.subr.mxu0 0.0
  %1629 = vmatpush2.msra.mxu0 0.0
  %1630 = vmatprep.subr.mxu0 0.0
  %1631 = vmatpush2.msra.mxu0 0.0
  %1632 = vmatprep.subr.mxu0 0.0
  %1633 = vmatpush2.msra.mxu0 0.0
  %1634 = vmatprep.subr.mxu0 0.0
  %1635 = vmatpush2.msra.mxu0 0.0
  %1636 = vmatprep.subr.mxu0 0.0
  %1637 = vmatpush2.msra.mxu0 0.0
  %1638 = vmatprep.subr.mxu0 0.0
  %1639 = vmatpush2.msra.mxu0 0.0
  %1640 = vmatprep.subr.mxu0 0.0
  %1641 = vmatpush2.msra.mxu0 0.0
  %1642 = vmatprep.subr.mxu0 0.0
  %1643 = vmatpush2.msra.mxu0 0.0
  %1644 = vmatprep.subr.mxu0 0.0
  %1645 = vmatpush2.msra.mxu0 0.0
  %1646 = vmatprep.subr.mxu0 0.0
  %1647 = vmatpush2.msra.mxu0 0.0
  %1648 = vmatprep.subr.mxu0 0.0
  %1649 = vmatpush2.msra.mxu0 0.0
  %1650 = vmatprep.subr.mxu0 0.0
  %1651 = vmatpush2.msra.mxu0 0.0
  %1652 = vmatprep.mubr.f32.mxu0 0.0
  %1653 = vmatmul.mubr.f32.gmra.mxu0 %v1586
  %v1654 = vpop.f32.mrf.mxu0
  %v1655 = vadd.f32 %v1085, %v1654
  %v1656 = vpop.f32.mrf.mxu0
  %1657 = vdwg.mxu0
  %vm1658 = vcmp.gt.f32.partialorder %v1655, 20.0
  %v1659 = vmin.f32 %v1655, 20.0
  %v1660 = vmul.f32 %v1659, 1.442695
  %v1661 = vpow.pop %v1660
  %v1662 = vadd.f32 %v1661, 1.0
  %v1663 = vlog2.pop %v1662
  %v1664 = vmul.f32 %v1663, 0.6931472
  %v1665 = vmul.f32 -0.5, %v1661
  %v1666 = vadd.f32 %v1665, 1.0
  %v1667 = vmul.f32 %v1666, %v1661
  %v1668 = vand.u32 2147483647, %v1661
  %vm1669 = vcmp.lt.f32.partialorder %v1668, 0.0004427343
  %v1670 = vsel %vm1669, %v1667, %v1664
  %v1671 = vsel %vm1658, %v1655, %v1670
  %v1673 = vsel %vm170, %v1671, 0
  %1675 = vmatprep.subr.mxu0 0.0
  %1676 = vmatpush1.msra.mxu0 0.0
  %1677 = vmatprep.subr.mxu0 0.0
  %1678 = vmatpush1.msra.mxu0 0.0
  %1679 = vmatprep.subr.mxu0 0.0
  %1680 = vmatpush1.msra.mxu0 0.0
  %1681 = vmatprep.subr.mxu0 0.0
  %1682 = vmatpush1.msra.mxu0 0.0
  %1683 = vmatprep.subr.mxu0 0.0
  %1684 = vmatpush1.msra.mxu0 0.0
  %1685 = vmatprep.subr.mxu0 0.0
  %1686 = vmatpush1.msra.mxu0 0.0
  %1687 = vmatprep.subr.mxu0 0.0
  %1688 = vmatpush1.msra.mxu0 0.0
  %1689 = vmatprep.subr.mxu0 0.0
  %1690 = vmatpush1.msra.mxu0 0.0
  %1691 = vmatprep.subr.mxu0 0.0
  %1692 = vmatpush1.msra.mxu0 %v40
  %1693 = vmatprep.subr.mxu0 0.0
  %1694 = vmatpush1.msra.mxu0 %v39
  %1695 = vmatprep.subr.mxu0 0.0
  %1696 = vmatpush1.msra.mxu0 %v38
  %1697 = vmatprep.subr.mxu0 0.0
  %1698 = vmatpush1.msra.mxu0 %v37
  %1699 = vmatprep.subr.mxu0 0.0
  %1700 = vmatpush1.msra.mxu0 %v36
  %1701 = vmatprep.subr.mxu0 0.0
  %1702 = vmatpush1.msra.mxu0 %v35
  %1703 = vmatprep.subr.mxu0 0.0
  %1704 = vmatpush1.msra.mxu0 %v34
  %1705 = vmatprep.subr.mxu0 0.0
  %1706 = vmatpush1.msra.mxu0 %v33
  %1707 = vmatprep.subr.mxu0 0.0
  %1708 = vmatpush2.msra.mxu0 0.0
  %1709 = vmatprep.subr.mxu0 0.0
  %1710 = vmatpush2.msra.mxu0 0.0
  %1711 = vmatprep.subr.mxu0 0.0
  %1712 = vmatpush2.msra.mxu0 0.0
  %1713 = vmatprep.subr.mxu0 0.0
  %1714 = vmatpush2.msra.mxu0 0.0
  %1715 = vmatprep.subr.mxu0 0.0
  %1716 = vmatpush2.msra.mxu0 0.0
  %1717 = vmatprep.subr.mxu0 0.0
  %1718 = vmatpush2.msra.mxu0 0.0
  %1719 = vmatprep.subr.mxu0 0.0
  %1720 = vmatpush2.msra.mxu0 0.0
  %1721 = vmatprep.subr.mxu0 0.0
  %1722 = vmatpush2.msra.mxu0 0.0
  %1723 = vmatprep.subr.mxu0 0.0
  %1724 = vmatpush2.msra.mxu0 0.0
  %1725 = vmatprep.subr.mxu0 0.0
  %1726 = vmatpush2.msra.mxu0 0.0
  %1727 = vmatprep.subr.mxu0 0.0
  %1728 = vmatpush2.msra.mxu0 0.0
  %1729 = vmatprep.subr.mxu0 0.0
  %1730 = vmatpush2.msra.mxu0 0.0
  %1731 = vmatprep.subr.mxu0 0.0
  %1732 = vmatpush2.msra.mxu0 0.0
  %1733 = vmatprep.subr.mxu0 0.0
  %1734 = vmatpush2.msra.mxu0 0.0
  %1735 = vmatprep.subr.mxu0 0.0
  %1736 = vmatpush2.msra.mxu0 0.0
  %1737 = vmatprep.subr.mxu0 0.0
  %1738 = vmatpush2.msra.mxu0 0.0
  %1739 = vmatprep.mubr.f32.mxu0 0.0
  %1740 = vmatmul.mubr.f32.gmra.mxu0 %v1673
  %v1741 = vpop.f32.mrf.mxu0
  %v1742 = vadd.f32 %v67, %v1741
  %v1743 = vpop.f32.mrf.mxu0
  %1744 = vdwg.mxu0
  %vm1745 = vcmp.gt.f32.partialorder %v1742, 20.0
  %v1746 = vmin.f32 %v1742, 20.0
  %v1747 = vmul.f32 %v1746, 1.442695
  %v1748 = vpow.pop %v1747
  %v1749 = vadd.f32 %v1748, 1.0
  %v1750 = vlog2.pop %v1749
  %v1751 = vmul.f32 %v1750, 0.6931472
  %v1752 = vmul.f32 -0.5, %v1748
  %v1753 = vadd.f32 %v1752, 1.0
  %v1754 = vmul.f32 %v1753, %v1748
  %v1755 = vand.u32 2147483647, %v1748
  %vm1756 = vcmp.lt.f32.partialorder %v1755, 0.0004427343
  %v1757 = vsel %vm1756, %v1754, %v1751
  %v1758 = vsel %vm1745, %v1742, %v1757
  %v1760 = vsel %vm170, %v1758, 0
  %1762 = vmatprep.subr.mxu0 0.0
  %1763 = vmatpush1.msra.mxu0 0.0
  %1764 = vmatprep.subr.mxu0 0.0
  %1765 = vmatpush1.msra.mxu0 0.0
  %1766 = vmatprep.subr.mxu0 0.0
  %1767 = vmatpush1.msra.mxu0 0.0
  %1768 = vmatprep.subr.mxu0 0.0
  %1769 = vmatpush1.msra.mxu0 0.0
  %1770 = vmatprep.subr.mxu0 0.0
  %1771 = vmatpush1.msra.mxu0 0.0
  %1772 = vmatprep.subr.mxu0 0.0
  %1773 = vmatpush1.msra.mxu0 0.0
  %1774 = vmatprep.subr.mxu0 0.0
  %1775 = vmatpush1.msra.mxu0 0.0
  %1776 = vmatprep.subr.mxu0 0.0
  %1777 = vmatpush1.msra.mxu0 0.0
  %1778 = vmatprep.subr.mxu0 0.0
  %1779 = vmatpush1.msra.mxu0 %v49
  %1780 = vmatprep.subr.mxu0 0.0
  %1781 = vmatpush1.msra.mxu0 %v48
  %1782 = vmatprep.subr.mxu0 0.0
  %1783 = vmatpush1.msra.mxu0 %v47
  %1784 = vmatprep.subr.mxu0 0.0
  %1785 = vmatpush1.msra.mxu0 %v46
  %1786 = vmatprep.subr.mxu0 0.0
  %1787 = vmatpush1.msra.mxu0 %v45
  %1788 = vmatprep.subr.mxu0 0.0
  %1789 = vmatpush1.msra.mxu0 %v44
  %1790 = vmatprep.subr.mxu0 0.0
  %1791 = vmatpush1.msra.mxu0 %v43
  %1792 = vmatprep.subr.mxu0 0.0
  %1793 = vmatpush1.msra.mxu0 %v42
  %1794 = vmatprep.subr.mxu0 0.0
  %1795 = vmatpush2.msra.mxu0 0.0
  %1796 = vmatprep.subr.mxu0 0.0
  %1797 = vmatpush2.msra.mxu0 0.0
  %1798 = vmatprep.subr.mxu0 0.0
  %1799 = vmatpush2.msra.mxu0 0.0
  %1800 = vmatprep.subr.mxu0 0.0
  %1801 = vmatpush2.msra.mxu0 0.0
  %1802 = vmatprep.subr.mxu0 0.0
  %1803 = vmatpush2.msra.mxu0 0.0
  %1804 = vmatprep.subr.mxu0 0.0
  %1805 = vmatpush2.msra.mxu0 0.0
  %1806 = vmatprep.subr.mxu0 0.0
  %1807 = vmatpush2.msra.mxu0 0.0
  %1808 = vmatprep.subr.mxu0 0.0
  %1809 = vmatpush2.msra.mxu0 0.0
  %1810 = vmatprep.subr.mxu0 0.0
  %1811 = vmatpush2.msra.mxu0 0.0
  %1812 = vmatprep.subr.mxu0 0.0
  %1813 = vmatpush2.msra.mxu0 0.0
  %1814 = vmatprep.subr.mxu0 0.0
  %1815 = vmatpush2.msra.mxu0 0.0
  %1816 = vmatprep.subr.mxu0 0.0
  %1817 = vmatpush2.msra.mxu0 0.0
  %1818 = vmatprep.subr.mxu0 0.0
  %1819 = vmatpush2.msra.mxu0 0.0
  %1820 = vmatprep.subr.mxu0 0.0
  %1821 = vmatpush2.msra.mxu0 0.0
  %1822 = vmatprep.subr.mxu0 0.0
  %1823 = vmatpush2.msra.mxu0 0.0
  %1824 = vmatprep.subr.mxu0 0.0
  %1825 = vmatpush2.msra.mxu0 0.0
  %1826 = vmatprep.mubr.f32.mxu0 0.0
  %1827 = vmatmul.mubr.f32.gmra.mxu0 %v1760
  %v1828 = vpop.f32.mrf.mxu0
  %v1829 = vadd.f32 %v73, %v1828
  %v1830 = vpop.f32.mrf.mxu0
  %1831 = vdwg.mxu0
  %v1832 = vmul.f32 %v1829, 0.5
  %v1833 = vadd.f32 %v1083, %v1832
  %v1835 = vsel %vm82, %v1833, 0
  %1837 = vmatprep.subr.mxu0 0.0
  %1838 = vmatpush1.msra.mxu0 0.0
  %1839 = vmatprep.subr.mxu0 0.0
  %1840 = vmatpush1.msra.mxu0 0.0
  %1841 = vmatprep.subr.mxu0 0.0
  %1842 = vmatpush1.msra.mxu0 0.0
  %1843 = vmatprep.subr.mxu0 0.0
  %1844 = vmatpush1.msra.mxu0 0.0
  %1845 = vmatprep.subr.mxu0 0.0
  %1846 = vmatpush1.msra.mxu0 0.0
  %1847 = vmatprep.subr.mxu0 0.0
  %1848 = vmatpush1.msra.mxu0 0.0
  %1849 = vmatprep.subr.mxu0 0.0
  %1850 = vmatpush1.msra.mxu0 0.0
  %1851 = vmatprep.subr.mxu0 0.0
  %1852 = vmatpush1.msra.mxu0 0.0
  %1853 = vmatprep.subr.mxu0 0.0
  %1854 = vmatpush1.msra.mxu0 0.0
  %1855 = vmatprep.subr.mxu0 0.0
  %1856 = vmatpush1.msra.mxu0 0.0
  %1857 = vmatprep.subr.mxu0 0.0
  %1858 = vmatpush1.msra.mxu0 0.0
  %1859 = vmatprep.subr.mxu0 0.0
  %1860 = vmatpush1.msra.mxu0 0.0
  %1861 = vmatprep.subr.mxu0 0.0
  %1862 = vmatpush1.msra.mxu0 0.0
  %1863 = vmatprep.subr.mxu0 0.0
  %1864 = vmatpush1.msra.mxu0 0.0
  %1865 = vmatprep.subr.mxu0 0.0
  %1866 = vmatpush1.msra.mxu0 %v31
  %1867 = vmatprep.subr.mxu0 0.0
  %1868 = vmatpush1.msra.mxu0 %v30
  %1869 = vmatprep.subr.mxu0 0.0
  %1870 = vmatpush2.msra.mxu0 0.0
  %1871 = vmatprep.subr.mxu0 0.0
  %1872 = vmatpush2.msra.mxu0 0.0
  %1873 = vmatprep.subr.mxu0 0.0
  %1874 = vmatpush2.msra.mxu0 0.0
  %1875 = vmatprep.subr.mxu0 0.0
  %1876 = vmatpush2.msra.mxu0 0.0
  %1877 = vmatprep.subr.mxu0 0.0
  %1878 = vmatpush2.msra.mxu0 0.0
  %1879 = vmatprep.subr.mxu0 0.0
  %1880 = vmatpush2.msra.mxu0 0.0
  %1881 = vmatprep.subr.mxu0 0.0
  %1882 = vmatpush2.msra.mxu0 0.0
  %1883 = vmatprep.subr.mxu0 0.0
  %1884 = vmatpush2.msra.mxu0 0.0
  %1885 = vmatprep.subr.mxu0 0.0
  %1886 = vmatpush2.msra.mxu0 0.0
  %1887 = vmatprep.subr.mxu0 0.0
  %1888 = vmatpush2.msra.mxu0 0.0
  %1889 = vmatprep.subr.mxu0 0.0
  %1890 = vmatpush2.msra.mxu0 0.0
  %1891 = vmatprep.subr.mxu0 0.0
  %1892 = vmatpush2.msra.mxu0 0.0
  %1893 = vmatprep.subr.mxu0 0.0
  %1894 = vmatpush2.msra.mxu0 0.0
  %1895 = vmatprep.subr.mxu0 0.0
  %1896 = vmatpush2.msra.mxu0 0.0
  %1897 = vmatprep.subr.mxu0 0.0
  %1898 = vmatpush2.msra.mxu0 0.0
  %1899 = vmatprep.subr.mxu0 0.0
  %1900 = vmatpush2.msra.mxu0 0.0
  %1901 = vmatprep.mubr.f32.mxu0 0.0
  %1902 = vmatmul.mubr.f32.gmra.mxu0 %v1835
  %v1903 = vpop.f32.mrf.mxu0
  %v1904 = vadd.f32 %v1086, %v1903
  %v1905 = vpop.f32.mrf.mxu0
  %1906 = vdwg.mxu0
  %vm1907 = vcmp.gt.f32.partialorder %v1904, 20.0
  %v1908 = vmin.f32 %v1904, 20.0
  %v1909 = vmul.f32 %v1908, 1.442695
  %v1910 = vpow.pop %v1909
  %v1911 = vadd.f32 %v1910, 1.0
  %v1912 = vlog2.pop %v1911
  %v1913 = vmul.f32 %v1912, 0.6931472
  %v1914 = vmul.f32 -0.5, %v1910
  %v1915 = vadd.f32 %v1914, 1.0
  %v1916 = vmul.f32 %v1915, %v1910
  %v1917 = vand.u32 2147483647, %v1910
  %vm1918 = vcmp.lt.f32.partialorder %v1917, 0.0004427343
  %v1919 = vsel %vm1918, %v1916, %v1913
  %v1920 = vsel %vm1907, %v1904, %v1919
  %v1922 = vsel %vm170, %v1920, 0
  %1924 = vmatprep.subr.mxu0 0.0
  %1925 = vmatpush1.msra.mxu0 0.0
  %1926 = vmatprep.subr.mxu0 0.0
  %1927 = vmatpush1.msra.mxu0 0.0
  %1928 = vmatprep.subr.mxu0 0.0
  %1929 = vmatpush1.msra.mxu0 0.0
  %1930 = vmatprep.subr.mxu0 0.0
  %1931 = vmatpush1.msra.mxu0 0.0
  %1932 = vmatprep.subr.mxu0 0.0
  %1933 = vmatpush1.msra.mxu0 0.0
  %1934 = vmatprep.subr.mxu0 0.0
  %1935 = vmatpush1.msra.mxu0 0.0
  %1936 = vmatprep.subr.mxu0 0.0
  %1937 = vmatpush1.msra.mxu0 0.0
  %1938 = vmatprep.subr.mxu0 0.0
  %1939 = vmatpush1.msra.mxu0 0.0
  %1940 = vmatprep.subr.mxu0 0.0
  %1941 = vmatpush1.msra.mxu0 %v40
  %1942 = vmatprep.subr.mxu0 0.0
  %1943 = vmatpush1.msra.mxu0 %v39
  %1944 = vmatprep.subr.mxu0 0.0
  %1945 = vmatpush1.msra.mxu0 %v38
  %1946 = vmatprep.subr.mxu0 0.0
  %1947 = vmatpush1.msra.mxu0 %v37
  %1948 = vmatprep.subr.mxu0 0.0
  %1949 = vmatpush1.msra.mxu0 %v36
  %1950 = vmatprep.subr.mxu0 0.0
  %1951 = vmatpush1.msra.mxu0 %v35
  %1952 = vmatprep.subr.mxu0 0.0
  %1953 = vmatpush1.msra.mxu0 %v34
  %1954 = vmatprep.subr.mxu0 0.0
  %1955 = vmatpush1.msra.mxu0 %v33
  %1956 = vmatprep.subr.mxu0 0.0
  %1957 = vmatpush2.msra.mxu0 0.0
  %1958 = vmatprep.subr.mxu0 0.0
  %1959 = vmatpush2.msra.mxu0 0.0
  %1960 = vmatprep.subr.mxu0 0.0
  %1961 = vmatpush2.msra.mxu0 0.0
  %1962 = vmatprep.subr.mxu0 0.0
  %1963 = vmatpush2.msra.mxu0 0.0
  %1964 = vmatprep.subr.mxu0 0.0
  %1965 = vmatpush2.msra.mxu0 0.0
  %1966 = vmatprep.subr.mxu0 0.0
  %1967 = vmatpush2.msra.mxu0 0.0
  %1968 = vmatprep.subr.mxu0 0.0
  %1969 = vmatpush2.msra.mxu0 0.0
  %1970 = vmatprep.subr.mxu0 0.0
  %1971 = vmatpush2.msra.mxu0 0.0
  %1972 = vmatprep.subr.mxu0 0.0
  %1973 = vmatpush2.msra.mxu0 0.0
  %1974 = vmatprep.subr.mxu0 0.0
  %1975 = vmatpush2.msra.mxu0 0.0
  %1976 = vmatprep.subr.mxu0 0.0
  %1977 = vmatpush2.msra.mxu0 0.0
  %1978 = vmatprep.subr.mxu0 0.0
  %1979 = vmatpush2.msra.mxu0 0.0
  %1980 = vmatprep.subr.mxu0 0.0
  %1981 = vmatpush2.msra.mxu0 0.0
  %1982 = vmatprep.subr.mxu0 0.0
  %1983 = vmatpush2.msra.mxu0 0.0
  %1984 = vmatprep.subr.mxu0 0.0
  %1985 = vmatpush2.msra.mxu0 0.0
  %1986 = vmatprep.subr.mxu0 0.0
  %1987 = vmatpush2.msra.mxu0 0.0
  %1988 = vmatprep.mubr.f32.mxu0 0.0
  %1989 = vmatmul.mubr.f32.gmra.mxu0 %v1922
  %v1990 = vpop.f32.mrf.mxu0
  %v1991 = vadd.f32 %v67, %v1990
  %v1992 = vpop.f32.mrf.mxu0
  %1993 = vdwg.mxu0
  %vm1994 = vcmp.gt.f32.partialorder %v1991, 20.0
  %v1995 = vmin.f32 %v1991, 20.0
  %v1996 = vmul.f32 %v1995, 1.442695
  %v1997 = vpow.pop %v1996
  %v1998 = vadd.f32 %v1997, 1.0
  %v1999 = vlog2.pop %v1998
  %v2000 = vmul.f32 %v1999, 0.6931472
  %v2001 = vmul.f32 -0.5, %v1997
  %v2002 = vadd.f32 %v2001, 1.0
  %v2003 = vmul.f32 %v2002, %v1997
  %v2004 = vand.u32 2147483647, %v1997
  %vm2005 = vcmp.lt.f32.partialorder %v2004, 0.0004427343
  %v2006 = vsel %vm2005, %v2003, %v2000
  %v2007 = vsel %vm1994, %v1991, %v2006
  %v2009 = vsel %vm170, %v2007, 0
  %2011 = vmatprep.subr.mxu0 0.0
  %2012 = vmatpush1.msra.mxu0 0.0
  %2013 = vmatprep.subr.mxu0 0.0
  %2014 = vmatpush1.msra.mxu0 0.0
  %2015 = vmatprep.subr.mxu0 0.0
  %2016 = vmatpush1.msra.mxu0 0.0
  %2017 = vmatprep.subr.mxu0 0.0
  %2018 = vmatpush1.msra.mxu0 0.0
  %2019 = vmatprep.subr.mxu0 0.0
  %2020 = vmatpush1.msra.mxu0 0.0
  %2021 = vmatprep.subr.mxu0 0.0
  %2022 = vmatpush1.msra.mxu0 0.0
  %2023 = vmatprep.subr.mxu0 0.0
  %2024 = vmatpush1.msra.mxu0 0.0
  %2025 = vmatprep.subr.mxu0 0.0
  %2026 = vmatpush1.msra.mxu0 0.0
  %2027 = vmatprep.subr.mxu0 0.0
  %2028 = vmatpush1.msra.mxu0 %v49
  %2029 = vmatprep.subr.mxu0 0.0
  %2030 = vmatpush1.msra.mxu0 %v48
  %2031 = vmatprep.subr.mxu0 0.0
  %2032 = vmatpush1.msra.mxu0 %v47
  %2033 = vmatprep.subr.mxu0 0.0
  %2034 = vmatpush1.msra.mxu0 %v46
  %2035 = vmatprep.subr.mxu0 0.0
  %2036 = vmatpush1.msra.mxu0 %v45
  %2037 = vmatprep.subr.mxu0 0.0
  %2038 = vmatpush1.msra.mxu0 %v44
  %2039 = vmatprep.subr.mxu0 0.0
  %2040 = vmatpush1.msra.mxu0 %v43
  %2041 = vmatprep.subr.mxu0 0.0
  %2042 = vmatpush1.msra.mxu0 %v42
  %2043 = vmatprep.subr.mxu0 0.0
  %2044 = vmatpush2.msra.mxu0 0.0
  %2045 = vmatprep.subr.mxu0 0.0
  %2046 = vmatpush2.msra.mxu0 0.0
  %2047 = vmatprep.subr.mxu0 0.0
  %2048 = vmatpush2.msra.mxu0 0.0
  %2049 = vmatprep.subr.mxu0 0.0
  %2050 = vmatpush2.msra.mxu0 0.0
  %2051 = vmatprep.subr.mxu0 0.0
  %2052 = vmatpush2.msra.mxu0 0.0
  %2053 = vmatprep.subr.mxu0 0.0
  %2054 = vmatpush2.msra.mxu0 0.0
  %2055 = vmatprep.subr.mxu0 0.0
  %2056 = vmatpush2.msra.mxu0 0.0
  %2057 = vmatprep.subr.mxu0 0.0
  %2058 = vmatpush2.msra.mxu0 0.0
  %2059 = vmatprep.subr.mxu0 0.0
  %2060 = vmatpush2.msra.mxu0 0.0
  %2061 = vmatprep.subr.mxu0 0.0
  %2062 = vmatpush2.msra.mxu0 0.0
  %2063 = vmatprep.subr.mxu0 0.0
  %2064 = vmatpush2.msra.mxu0 0.0
  %2065 = vmatprep.subr.mxu0 0.0
  %2066 = vmatpush2.msra.mxu0 0.0
  %2067 = vmatprep.subr.mxu0 0.0
  %2068 = vmatpush2.msra.mxu0 0.0
  %2069 = vmatprep.subr.mxu0 0.0
  %2070 = vmatpush2.msra.mxu0 0.0
  %2071 = vmatprep.subr.mxu0 0.0
  %2072 = vmatpush2.msra.mxu0 0.0
  %2073 = vmatprep.subr.mxu0 0.0
  %2074 = vmatpush2.msra.mxu0 0.0
  %2075 = vmatprep.mubr.f32.mxu0 0.0
  %2076 = vmatmul.mubr.f32.gmra.mxu0 %v2009
  %v2077 = vpop.f32.mrf.mxu0
  %v2078 = vadd.f32 %v73, %v2077
  %v2079 = vpop.f32.mrf.mxu0
  %2080 = vdwg.mxu0
  %v2081 = vadd.f32 %v1580, %v1829
  %v2082 = vmul.f32 %v2081, 2.0
  %v2083 = vadd.f32 %v1331, %v2082
  %v2084 = vadd.f32 %v2083, %v2078
  %v2085 = vmul.f32 %v2084, 0.083333336
  %v2086 = vadd.f32 %v1083, %v2085
  %vm2087 = vcmask 125952
  %2088 = vst.msk [vmem:[%s8] sm:$0xf] %vm2087, %v2086
  // Predicated region
  $region34: #{additive_forward.1} parent=0 // pred_check
    _
  $region35: #{additive_forward.1} parent=0 // pred_check_branch
    %2090 = sbr.rel (0) target = $region37
  $region36: #{additive_forward.1} parent=0 // pred_region
    _
  $region37: #{additive_forward.1} parent=0 // pred_fallthru
    _
  // Predicated region
  $region38: #{additive_forward.1} parent=0 // pred_check
    _
  $region39: #{additive_forward.1} parent=0 // pred_check_branch
    %2092 = sbr.rel (0) target = $region41
  $region40: #{additive_forward.1} parent=0 // pred_region
    _
  $region41: #{additive_forward.1} parent=0 // pred_fallthru
    _

</llo_original>
